<compile_context>
chip_gen: v7x
topology: tpu7x:2x2x1
jax: 0.10.0
libtpu: 0.0.40
codegen_flags: <defaults>
</compile_context>

<pallas_src>
import numpy as np
import jax
import jax.numpy as jnp
from jax.experimental import pallas as pl
from jax.experimental.pallas import tpu as pltpu


# ----------------------------------------------------------------------------
# Geometry implied by the PyTorch module (MNIST 1x28x28; fc1 in=256 = 16*4*4)
# ----------------------------------------------------------------------------
IN_H = IN_W = 28
K, STRIDE = 5, 2
C1_OUT, C2_OUT = 8, 16
H1 = (IN_H - K) // STRIDE + 1          # 12
H2 = (H1 - K) // STRIDE + 1            # 4

NUM_BANDS = H1                         # 12 conv1 output rows -> 12 band matmuls
K_BAND = 144                           # 5*28 = 140 band rows, padded to 144
BAND_N = 128                           # 8*12 = 96 band cols, lane-padded to 128
D_IN = IN_H * IN_W                     # 784
D_IN_PAD = 896                         # 784 -> 7*128
D_H1 = NUM_BANDS * BAND_N              # 1536 (band-major conv1 activations)
D_C2 = C2_OUT * H2 * H2                # 256
D_FC1 = 96
D_FC1_PAD = 128
D_LAT = 32
D_HEAD_PAD = 128                       # [mean | logvar | zero-pad]


def _round_up(x, m):
    return ((x + m - 1) // m) * m


# ----------------------------------------------------------------------------
# Pallas kernel: banded conv1 + 3 dense matmul layers, fully resident in VMEM
# ----------------------------------------------------------------------------
def _encoder_kernel(x_ref, w1_ref, b1_ref, w2_ref, b2_ref,
                    w3_ref, b3_ref, w4_ref, b4_ref, o_ref):
    # conv1 as 12 band matmuls against ONE shared (144,128) band matrix.
    # Band ho reads the static window x[:, 56*ho : 56*ho+144] of the resident
    # x tile (image rows 2*ho .. 2*ho+4, plus a few extra cols hitting zero
    # weight rows).  f32 accumulate, bias+relu in f32, cast to bf16.
    w1 = w1_ref[...]
    b1 = b1_ref[...]
    bands = []
    for ho in range(NUM_BANDS):
        start = STRIDE * ho * IN_W                     # 56 * ho (static)
        seg = x_ref[:, start:start + K_BAND]           # (bm, 144) bf16
        y = jnp.dot(seg, w1, preferred_element_type=jnp.float32)
        bands.append(jnp.maximum(y + b1, 0.0).astype(jnp.bfloat16))
    h1 = jnp.concatenate(bands, axis=1)                # (bm, 1536) bf16

    def layer(h, w_ref, b_ref):
        y = jnp.dot(h, w_ref[...], preferred_element_type=jnp.float32)
        return jnp.maximum(y + b_ref[...], 0.0)        # f32 bias + relu

    h2 = layer(h1, w2_ref, b2_ref).astype(jnp.bfloat16)   # conv2      (bm, 256)
    h3 = layer(h2, w3_ref, b3_ref).astype(jnp.bfloat16)   # fc1        (bm, 128)
    o_ref[...] = layer(h3, w4_ref, b4_ref).astype(o_ref.dtype)  # heads (bm, 128)


# ----------------------------------------------------------------------------
# One-time parameter preparation (zero per-forward cost)
# ----------------------------------------------------------------------------
def _conv1_band_matrix(w):
    """Shared (K_BAND, BAND_N) matrix applying conv1 to one 5-row input band.
    Row:  kh*28 + 2*wo + kw   (flattened position inside the 5x28 band)
    Col:  co*12 + wo          (band-major conv1 output layout, zero-padded)."""
    w = np.asarray(w, np.float32)                       # (8, 1, 5, 5) OIHW
    m = np.zeros((K_BAND, BAND_N), np.float32)
    co, kh, kw, wo = np.meshgrid(np.arange(C1_OUT), np.arange(K),
                                 np.arange(K), np.arange(H1), indexing="ij")
    rows = kh * IN_W + STRIDE * wo + kw
    cols = co * H1 + wo
    m[rows.ravel(), cols.ravel()] = w[co, 0, kh, kw].ravel()
    return m


def _conv2_matrix(w):
    """(1536, 256) dense matrix: band-major conv1 activations (row index
    ho1*128 + ci*12 + wo1) -> torch .view(-1, 256) ordering (co*16+ho*4+wo)."""
    w = np.asarray(w, np.float32)                       # (16, 8, 5, 5) OIHW
    m = np.zeros((D_H1, D_C2), np.float32)
    co, ci, kh, kw, ho, wo = np.meshgrid(
        np.arange(C2_OUT), np.arange(C1_OUT), np.arange(K), np.arange(K),
        np.arange(H2), np.arange(H2), indexing="ij")
    rows = (STRIDE * ho + kh) * BAND_N + ci * H1 + (STRIDE * wo + kw)
    cols = co * (H2 * H2) + ho * H2 + wo
    m[rows.ravel(), cols.ravel()] = w[co, ci, kh, kw].ravel()
    return m


def prepare_params(params):
    """Band-densify conv1, densify conv2 for the band-major layout, pad fc1
    to 128 lanes, fuse+pad the mean/logvar heads; weights -> bf16."""
    w1 = _conv1_band_matrix(params["conv1_w"])                        # (144, 128)
    b1 = np.zeros((BAND_N,), np.float32)
    b1[:C1_OUT * H1] = np.repeat(np.asarray(params["conv1_b"], np.float32), H1)

    w2 = _conv2_matrix(params["conv2_w"])                             # (1536, 256)
    b2 = np.repeat(np.asarray(params["conv2_b"], np.float32), H2 * H2)  # (256,)

    w3 = np.zeros((D_C2, D_FC1_PAD), np.float32)                      # (256, 128)
    w3[:, :D_FC1] = np.asarray(params["fc1_w"], np.float32).T
    b3 = np.zeros((D_FC1_PAD,), np.float32)
    b3[:D_FC1] = np.asarray(params["fc1_b"], np.float32)

    w4 = np.zeros((D_FC1_PAD, D_HEAD_PAD), np.float32)                # (128, 128)
    w4[:D_FC1, :D_LAT] = np.asarray(params["mean_w"], np.float32).T
    w4[:D_FC1, D_LAT:2 * D_LAT] = np.asarray(params["logvar_w"], np.float32).T
    b4 = np.zeros((D_HEAD_PAD,), np.float32)
    b4[:D_LAT] = np.asarray(params["mean_b"], np.float32)
    b4[D_LAT:2 * D_LAT] = np.asarray(params["logvar_b"], np.float32)

    as_bf16 = lambda a: jnp.asarray(a, dtype=jnp.bfloat16)
    as_row = lambda b: jnp.asarray(b.reshape(1, -1), dtype=jnp.float32)
    return {
        "w1": as_bf16(w1), "b1": as_row(b1),
        "w2": as_bf16(w2), "b2": as_row(b2),
        "w3": as_bf16(w3), "b3": as_row(b3),
        "w4": as_bf16(w4), "b4": as_row(b4),
    }


# ----------------------------------------------------------------------------
# Forward pass: one pallas_call, batch tiled on a "parallel" grid axis
# ----------------------------------------------------------------------------
def encoder_forward(prep, x):
    """x: (N, 1, 28, 28) float32 -> (mean (N, 32), logvar (N, 32))"""
    n = x.shape[0]
    x_flat = x.reshape(n, D_IN).astype(jnp.float32)
    x_flat = jnp.pad(x_flat, ((0, 0), (0, D_IN_PAD - D_IN)))   # 784 -> 896 lanes

    bm = min(256, _round_up(n, 16))            # bf16 sublane tile is 16
    m_pad = _round_up(n, bm)
    if m_pad != n:
        x_flat = jnp.pad(x_flat, ((0, m_pad - n), (0, 0)))
    x_bf16 = x_flat.astype(jnp.bfloat16)
    grid = (m_pad // bm,)

    w1, b1 = prep["w1"], prep["b1"]
    w2, b2 = prep["w2"], prep["b2"]
    w3, b3 = prep["w3"], prep["b3"]
    w4, b4 = prep["w4"], prep["b4"]

    def const_spec(a):
        # Full-array block, constant index_map -> DMA'd into VMEM only once.
        return pl.BlockSpec(a.shape, lambda i: (0, 0))

    flops = 2 * m_pad * (NUM_BANDS * K_BAND * BAND_N + D_H1 * D_C2
                         + D_C2 * D_FC1_PAD + D_FC1_PAD * D_HEAD_PAD)
    w_bytes = sum(int(a.size) * a.dtype.itemsize
                  for a in (w1, b1, w2, b2, w3, b3, w4, b4))
    bytes_accessed = 2 * m_pad * D_IN_PAD + w_bytes + 4 * m_pad * D_HEAD_PAD

    out = pl.pallas_call(
        _encoder_kernel,
        out_shape=jax.ShapeDtypeStruct((m_pad, D_HEAD_PAD), jnp.float32),
        grid=grid,
        in_specs=[pl.BlockSpec((bm, D_IN_PAD), lambda i: (i, 0))]
                 + [const_spec(a) for a in (w1, b1, w2, b2, w3, b3, w4, b4)],
        out_specs=pl.BlockSpec((bm, D_HEAD_PAD), lambda i: (i, 0)),
        compiler_params=pltpu.CompilerParams(
            # On v7x this axis can be pltpu.CORE_PARALLEL to use both TCs.
            dimension_semantics=("parallel",),
            vmem_limit_bytes=32 * 1024 * 1024),
        cost_estimate=pl.CostEstimate(flops=flops, transcendentals=0,
                                      bytes_accessed=bytes_accessed),
    )(x_bf16, w1, b1, w2, b2, w3, b3, w4, b4)

    mean = out[:n, :D_LAT]
    logvar = out[:n, D_LAT:2 * D_LAT]
    return mean, logvar


# ----------------------------------------------------------------------------
# Parameter init (PyTorch layouts) and pure-JAX f32 reference
# ----------------------------------------------------------------------------
def init_params(key):
    ks = jax.random.split(key, 10)
    s = 0.1
    return {
        "conv1_w": jax.random.normal(ks[0], (8, 1, 5, 5), jnp.float32) * s,
        "conv1_b": jax.random.normal(ks[1], (8,), jnp.float32) * s,
        "conv2_w": jax.random.normal(ks[2], (16, 8, 5, 5), jnp.float32) * s,
        "conv2_b": jax.random.normal(ks[3], (16,), jnp.float32) * s,
        "fc1_w": jax.random.normal(ks[4], (96, 256), jnp.float32) * s,
        "fc1_b": jax.random.normal(ks[5], (96,), jnp.float32) * s,
        "mean_w": jax.random.normal(ks[6], (32, 96), jnp.float32) * s,
        "mean_b": jax.random.normal(ks[7], (32,), jnp.float32) * s,
        "logvar_w": jax.random.normal(ks[8], (32, 96), jnp.float32) * s,
        "logvar_b": jax.random.normal(ks[9], (32,), jnp.float32) * s,
    }


def encoder_reference(params, x):
    prec = jax.lax.Precision.HIGHEST

    def conv(h, w, b, stride):
        y = jax.lax.conv_general_dilated(
            h, w, window_strides=(stride, stride), padding="VALID",
            dimension_numbers=("NCHW", "OIHW", "NCHW"), precision=prec)
        return jax.nn.relu(y + b[None, :, None, None])

    n = x.shape[0]
    h = conv(x, params["conv1_w"], params["conv1_b"], 2)       # (N, 8, 12, 12)
    h = conv(h, params["conv2_w"], params["conv2_b"], 2)       # (N, 16, 4, 4)
    h = h.reshape(n, 256)                                      # torch .view(-1, 256)
    h = jax.nn.relu(jnp.dot(h, params["fc1_w"].T, precision=prec) + params["fc1_b"])
    mean = jax.nn.relu(jnp.dot(h, params["mean_w"].T, precision=prec) + params["mean_b"])
    logvar = jax.nn.relu(jnp.dot(h, params["logvar_w"].T, precision=prec) + params["logvar_b"])
    return mean, logvar


if __name__ == "__main__":
    key = jax.random.PRNGKey(0)
    k_param, k_x = jax.random.split(key)
    params = init_params(k_param)
    prep = prepare_params(params)

    # MNIST-shaped input implied by fc1's in_features = 256 (= 16*4*4).
    x = jax.random.normal(k_x, (2, 1, 28, 28), jnp.float32)

    fwd = jax.jit(encoder_forward)
    mean, logvar = jax.block_until_ready(fwd(prep, x))
    ref_mean, ref_logvar = jax.block_until_ready(encoder_reference(params, x))

    assert mean.shape == (2, 32) and logvar.shape == (2, 32)
    assert jnp.allclose(mean, ref_mean, atol=2e-2, rtol=2e-2), (
        float(jnp.max(jnp.abs(mean - ref_mean))))
    assert jnp.allclose(logvar, ref_logvar, atol=2e-2, rtol=2e-2), (
        float(jnp.max(jnp.abs(logvar - ref_logvar))))
    print("KERNEL_OK")
</pallas_src>

<mosaic_0001>
module attributes {stable_mosaic.version = 11 : i64} {
  func.func @_encoder_kernel(%arg0: i32, %arg1: memref<16x896xbf16, #tpu.memory_space<vmem>>, %arg2: memref<144x128xbf16, #tpu.memory_space<vmem>>, %arg3: memref<1x128xf32, #tpu.memory_space<vmem>>, %arg4: memref<1536x256xbf16, #tpu.memory_space<vmem>>, %arg5: memref<1x256xf32, #tpu.memory_space<vmem>>, %arg6: memref<256x128xbf16, #tpu.memory_space<vmem>>, %arg7: memref<1x128xf32, #tpu.memory_space<vmem>>, %arg8: memref<128x128xbf16, #tpu.memory_space<vmem>>, %arg9: memref<1x128xf32, #tpu.memory_space<vmem>>, %arg10: memref<16x128xf32, #tpu.memory_space<vmem>>) attributes {dimension_semantics = [#tpu.dimension_semantics<parallel>], iteration_bounds = array<i64: 1>, scalar_prefetch = 0 : i64, scratch_operands = 0 : i64, tpu.core_type = #tpu.core_type<tc>, window_params = [{transform_indices = @transform_0, window_bounds = array<i64: 16, 896>}, {pipeline_mode = #tpu.pipeline_mode<synchronous>, transform_indices = @transform_1, window_bounds = array<i64: 144, 128>}, {pipeline_mode = #tpu.pipeline_mode<synchronous>, transform_indices = @transform_2, window_bounds = array<i64: 1, 128>}, {pipeline_mode = #tpu.pipeline_mode<synchronous>, transform_indices = @transform_3, window_bounds = array<i64: 1536, 256>}, {pipeline_mode = #tpu.pipeline_mode<synchronous>, transform_indices = @transform_4, window_bounds = array<i64: 1, 256>}, {pipeline_mode = #tpu.pipeline_mode<synchronous>, transform_indices = @transform_5, window_bounds = array<i64: 256, 128>}, {pipeline_mode = #tpu.pipeline_mode<synchronous>, transform_indices = @transform_6, window_bounds = array<i64: 1, 128>}, {pipeline_mode = #tpu.pipeline_mode<synchronous>, transform_indices = @transform_7, window_bounds = array<i64: 128, 128>}, {pipeline_mode = #tpu.pipeline_mode<synchronous>, transform_indices = @transform_8, window_bounds = array<i64: 1, 128>}, {transform_indices = @transform_9, window_bounds = array<i64: 16, 128>}]} {
    %c0 = arith.constant 0 : index
    %c0_0 = arith.constant 0 : index
    %0 = vector.load %arg2[%c0, %c0_0] : memref<144x128xbf16, #tpu.memory_space<vmem>>, vector<144x128xbf16>
    %c0_1 = arith.constant 0 : index
    %c0_2 = arith.constant 0 : index
    %1 = vector.load %arg3[%c0_1, %c0_2] : memref<1x128xf32, #tpu.memory_space<vmem>>, vector<1x128xf32>
    %c0_3 = arith.constant 0 : index
    %c0_4 = arith.constant 0 : index
    %2 = vector.load %arg1[%c0_3, %c0_4] : memref<16x896xbf16, #tpu.memory_space<vmem>>, vector<16x144xbf16>
    %cst = arith.constant dense<0.000000e+00> : vector<16x128xf32>
    %3 = tpu.matmul %2, %0, %cst {dimension_numbers = #tpu.dot_dimension_numbers<[1], [0], [0], [1], [0, 0, 1, 1], [], []>} : vector<16x144xbf16>, vector<144x128xbf16>, vector<16x128xf32> -> vector<16x128xf32>
    %4 = vector.broadcast %1 : vector<1x128xf32> to vector<16x128xf32>
    %5 = arith.addf %3, %4 : vector<16x128xf32>
    %cst_5 = arith.constant 0.000000e+00 : f32
    %6 = vector.broadcast %cst_5 : f32 to vector<16x128xf32>
    %7 = arith.maximumf %5, %6 : vector<16x128xf32>
    %8 = arith.truncf %7 : vector<16x128xf32> to vector<16x128xbf16>
    %c0_6 = arith.constant 0 : index
    %c56 = arith.constant 56 : index
    %9 = vector.load %arg1[%c0_6, %c56] : memref<16x896xbf16, #tpu.memory_space<vmem>>, vector<16x144xbf16>
    %cst_7 = arith.constant dense<0.000000e+00> : vector<16x128xf32>
    %10 = tpu.matmul %9, %0, %cst_7 {dimension_numbers = #tpu.dot_dimension_numbers<[1], [0], [0], [1], [0, 0, 1, 1], [], []>} : vector<16x144xbf16>, vector<144x128xbf16>, vector<16x128xf32> -> vector<16x128xf32>
    %11 = vector.broadcast %1 : vector<1x128xf32> to vector<16x128xf32>
    %12 = arith.addf %10, %11 : vector<16x128xf32>
    %cst_8 = arith.constant 0.000000e+00 : f32
    %13 = vector.broadcast %cst_8 : f32 to vector<16x128xf32>
    %14 = arith.maximumf %12, %13 : vector<16x128xf32>
    %15 = arith.truncf %14 : vector<16x128xf32> to vector<16x128xbf16>
    %c0_9 = arith.constant 0 : index
    %c112 = arith.constant 112 : index
    %16 = vector.load %arg1[%c0_9, %c112] : memref<16x896xbf16, #tpu.memory_space<vmem>>, vector<16x144xbf16>
    %cst_10 = arith.constant dense<0.000000e+00> : vector<16x128xf32>
    %17 = tpu.matmul %16, %0, %cst_10 {dimension_numbers = #tpu.dot_dimension_numbers<[1], [0], [0], [1], [0, 0, 1, 1], [], []>} : vector<16x144xbf16>, vector<144x128xbf16>, vector<16x128xf32> -> vector<16x128xf32>
    %18 = vector.broadcast %1 : vector<1x128xf32> to vector<16x128xf32>
    %19 = arith.addf %17, %18 : vector<16x128xf32>
    %cst_11 = arith.constant 0.000000e+00 : f32
    %20 = vector.broadcast %cst_11 : f32 to vector<16x128xf32>
    %21 = arith.maximumf %19, %20 : vector<16x128xf32>
    %22 = arith.truncf %21 : vector<16x128xf32> to vector<16x128xbf16>
    %c0_12 = arith.constant 0 : index
    %c168 = arith.constant 168 : index
    %23 = vector.load %arg1[%c0_12, %c168] : memref<16x896xbf16, #tpu.memory_space<vmem>>, vector<16x144xbf16>
    %cst_13 = arith.constant dense<0.000000e+00> : vector<16x128xf32>
    %24 = tpu.matmul %23, %0, %cst_13 {dimension_numbers = #tpu.dot_dimension_numbers<[1], [0], [0], [1], [0, 0, 1, 1], [], []>} : vector<16x144xbf16>, vector<144x128xbf16>, vector<16x128xf32> -> vector<16x128xf32>
    %25 = vector.broadcast %1 : vector<1x128xf32> to vector<16x128xf32>
    %26 = arith.addf %24, %25 : vector<16x128xf32>
    %cst_14 = arith.constant 0.000000e+00 : f32
    %27 = vector.broadcast %cst_14 : f32 to vector<16x128xf32>
    %28 = arith.maximumf %26, %27 : vector<16x128xf32>
    %29 = arith.truncf %28 : vector<16x128xf32> to vector<16x128xbf16>
    %c0_15 = arith.constant 0 : index
    %c224 = arith.constant 224 : index
    %30 = vector.load %arg1[%c0_15, %c224] : memref<16x896xbf16, #tpu.memory_space<vmem>>, vector<16x144xbf16>
    %cst_16 = arith.constant dense<0.000000e+00> : vector<16x128xf32>
    %31 = tpu.matmul %30, %0, %cst_16 {dimension_numbers = #tpu.dot_dimension_numbers<[1], [0], [0], [1], [0, 0, 1, 1], [], []>} : vector<16x144xbf16>, vector<144x128xbf16>, vector<16x128xf32> -> vector<16x128xf32>
    %32 = vector.broadcast %1 : vector<1x128xf32> to vector<16x128xf32>
    %33 = arith.addf %31, %32 : vector<16x128xf32>
    %cst_17 = arith.constant 0.000000e+00 : f32
    %34 = vector.broadcast %cst_17 : f32 to vector<16x128xf32>
    %35 = arith.maximumf %33, %34 : vector<16x128xf32>
    %36 = arith.truncf %35 : vector<16x128xf32> to vector<16x128xbf16>
    %c0_18 = arith.constant 0 : index
    %c280 = arith.constant 280 : index
    %37 = vector.load %arg1[%c0_18, %c280] : memref<16x896xbf16, #tpu.memory_space<vmem>>, vector<16x144xbf16>
    %cst_19 = arith.constant dense<0.000000e+00> : vector<16x128xf32>
    %38 = tpu.matmul %37, %0, %cst_19 {dimension_numbers = #tpu.dot_dimension_numbers<[1], [0], [0], [1], [0, 0, 1, 1], [], []>} : vector<16x144xbf16>, vector<144x128xbf16>, vector<16x128xf32> -> vector<16x128xf32>
    %39 = vector.broadcast %1 : vector<1x128xf32> to vector<16x128xf32>
    %40 = arith.addf %38, %39 : vector<16x128xf32>
    %cst_20 = arith.constant 0.000000e+00 : f32
    %41 = vector.broadcast %cst_20 : f32 to vector<16x128xf32>
    %42 = arith.maximumf %40, %41 : vector<16x128xf32>
    %43 = arith.truncf %42 : vector<16x128xf32> to vector<16x128xbf16>
    %c0_21 = arith.constant 0 : index
    %c336 = arith.constant 336 : index
    %44 = vector.load %arg1[%c0_21, %c336] : memref<16x896xbf16, #tpu.memory_space<vmem>>, vector<16x144xbf16>
    %cst_22 = arith.constant dense<0.000000e+00> : vector<16x128xf32>
    %45 = tpu.matmul %44, %0, %cst_22 {dimension_numbers = #tpu.dot_dimension_numbers<[1], [0], [0], [1], [0, 0, 1, 1], [], []>} : vector<16x144xbf16>, vector<144x128xbf16>, vector<16x128xf32> -> vector<16x128xf32>
    %46 = vector.broadcast %1 : vector<1x128xf32> to vector<16x128xf32>
    %47 = arith.addf %45, %46 : vector<16x128xf32>
    %cst_23 = arith.constant 0.000000e+00 : f32
    %48 = vector.broadcast %cst_23 : f32 to vector<16x128xf32>
    %49 = arith.maximumf %47, %48 : vector<16x128xf32>
    %50 = arith.truncf %49 : vector<16x128xf32> to vector<16x128xbf16>
    %c0_24 = arith.constant 0 : index
    %c392 = arith.constant 392 : index
    %51 = vector.load %arg1[%c0_24, %c392] : memref<16x896xbf16, #tpu.memory_space<vmem>>, vector<16x144xbf16>
    %cst_25 = arith.constant dense<0.000000e+00> : vector<16x128xf32>
    %52 = tpu.matmul %51, %0, %cst_25 {dimension_numbers = #tpu.dot_dimension_numbers<[1], [0], [0], [1], [0, 0, 1, 1], [], []>} : vector<16x144xbf16>, vector<144x128xbf16>, vector<16x128xf32> -> vector<16x128xf32>
    %53 = vector.broadcast %1 : vector<1x128xf32> to vector<16x128xf32>
    %54 = arith.addf %52, %53 : vector<16x128xf32>
    %cst_26 = arith.constant 0.000000e+00 : f32
    %55 = vector.broadcast %cst_26 : f32 to vector<16x128xf32>
    %56 = arith.maximumf %54, %55 : vector<16x128xf32>
    %57 = arith.truncf %56 : vector<16x128xf32> to vector<16x128xbf16>
    %c0_27 = arith.constant 0 : index
    %c448 = arith.constant 448 : index
    %58 = vector.load %arg1[%c0_27, %c448] : memref<16x896xbf16, #tpu.memory_space<vmem>>, vector<16x144xbf16>
    %cst_28 = arith.constant dense<0.000000e+00> : vector<16x128xf32>
    %59 = tpu.matmul %58, %0, %cst_28 {dimension_numbers = #tpu.dot_dimension_numbers<[1], [0], [0], [1], [0, 0, 1, 1], [], []>} : vector<16x144xbf16>, vector<144x128xbf16>, vector<16x128xf32> -> vector<16x128xf32>
    %60 = vector.broadcast %1 : vector<1x128xf32> to vector<16x128xf32>
    %61 = arith.addf %59, %60 : vector<16x128xf32>
    %cst_29 = arith.constant 0.000000e+00 : f32
    %62 = vector.broadcast %cst_29 : f32 to vector<16x128xf32>
    %63 = arith.maximumf %61, %62 : vector<16x128xf32>
    %64 = arith.truncf %63 : vector<16x128xf32> to vector<16x128xbf16>
    %c0_30 = arith.constant 0 : index
    %c504 = arith.constant 504 : index
    %65 = vector.load %arg1[%c0_30, %c504] : memref<16x896xbf16, #tpu.memory_space<vmem>>, vector<16x144xbf16>
    %cst_31 = arith.constant dense<0.000000e+00> : vector<16x128xf32>
    %66 = tpu.matmul %65, %0, %cst_31 {dimension_numbers = #tpu.dot_dimension_numbers<[1], [0], [0], [1], [0, 0, 1, 1], [], []>} : vector<16x144xbf16>, vector<144x128xbf16>, vector<16x128xf32> -> vector<16x128xf32>
    %67 = vector.broadcast %1 : vector<1x128xf32> to vector<16x128xf32>
    %68 = arith.addf %66, %67 : vector<16x128xf32>
    %cst_32 = arith.constant 0.000000e+00 : f32
    %69 = vector.broadcast %cst_32 : f32 to vector<16x128xf32>
    %70 = arith.maximumf %68, %69 : vector<16x128xf32>
    %71 = arith.truncf %70 : vector<16x128xf32> to vector<16x128xbf16>
    %c0_33 = arith.constant 0 : index
    %c560 = arith.constant 560 : index
    %72 = vector.load %arg1[%c0_33, %c560] : memref<16x896xbf16, #tpu.memory_space<vmem>>, vector<16x144xbf16>
    %cst_34 = arith.constant dense<0.000000e+00> : vector<16x128xf32>
    %73 = tpu.matmul %72, %0, %cst_34 {dimension_numbers = #tpu.dot_dimension_numbers<[1], [0], [0], [1], [0, 0, 1, 1], [], []>} : vector<16x144xbf16>, vector<144x128xbf16>, vector<16x128xf32> -> vector<16x128xf32>
    %74 = vector.broadcast %1 : vector<1x128xf32> to vector<16x128xf32>
    %75 = arith.addf %73, %74 : vector<16x128xf32>
    %cst_35 = arith.constant 0.000000e+00 : f32
    %76 = vector.broadcast %cst_35 : f32 to vector<16x128xf32>
    %77 = arith.maximumf %75, %76 : vector<16x128xf32>
    %78 = arith.truncf %77 : vector<16x128xf32> to vector<16x128xbf16>
    %c0_36 = arith.constant 0 : index
    %c616 = arith.constant 616 : index
    %79 = vector.load %arg1[%c0_36, %c616] : memref<16x896xbf16, #tpu.memory_space<vmem>>, vector<16x144xbf16>
    %cst_37 = arith.constant dense<0.000000e+00> : vector<16x128xf32>
    %80 = tpu.matmul %79, %0, %cst_37 {dimension_numbers = #tpu.dot_dimension_numbers<[1], [0], [0], [1], [0, 0, 1, 1], [], []>} : vector<16x144xbf16>, vector<144x128xbf16>, vector<16x128xf32> -> vector<16x128xf32>
    %81 = vector.broadcast %1 : vector<1x128xf32> to vector<16x128xf32>
    %82 = arith.addf %80, %81 : vector<16x128xf32>
    %cst_38 = arith.constant 0.000000e+00 : f32
    %83 = vector.broadcast %cst_38 : f32 to vector<16x128xf32>
    %84 = arith.maximumf %82, %83 : vector<16x128xf32>
    %85 = arith.truncf %84 : vector<16x128xf32> to vector<16x128xbf16>
    %86 = tpu.concatenate %8, %15, %22, %29, %36, %43, %50, %57, %64, %71, %78, %85 in 1 : vector<16x128xbf16>, vector<16x128xbf16>, vector<16x128xbf16>, vector<16x128xbf16>, vector<16x128xbf16>, vector<16x128xbf16>, vector<16x128xbf16>, vector<16x128xbf16>, vector<16x128xbf16>, vector<16x128xbf16>, vector<16x128xbf16>, vector<16x128xbf16> -> vector<16x1536xbf16>
    %c0_39 = arith.constant 0 : index
    %c0_40 = arith.constant 0 : index
    %87 = vector.load %arg4[%c0_39, %c0_40] : memref<1536x256xbf16, #tpu.memory_space<vmem>>, vector<1536x256xbf16>
    %cst_41 = arith.constant dense<0.000000e+00> : vector<16x256xf32>
    %88 = tpu.matmul %86, %87, %cst_41 {dimension_numbers = #tpu.dot_dimension_numbers<[1], [0], [0], [1], [0, 0, 1, 1], [], []>} : vector<16x1536xbf16>, vector<1536x256xbf16>, vector<16x256xf32> -> vector<16x256xf32>
    %c0_42 = arith.constant 0 : index
    %c0_43 = arith.constant 0 : index
    %89 = vector.load %arg5[%c0_42, %c0_43] : memref<1x256xf32, #tpu.memory_space<vmem>>, vector<1x256xf32>
    %90 = vector.broadcast %89 : vector<1x256xf32> to vector<16x256xf32>
    %91 = arith.addf %88, %90 : vector<16x256xf32>
    %cst_44 = arith.constant 0.000000e+00 : f32
    %92 = vector.broadcast %cst_44 : f32 to vector<16x256xf32>
    %93 = arith.maximumf %91, %92 : vector<16x256xf32>
    %94 = arith.truncf %93 : vector<16x256xf32> to vector<16x256xbf16>
    %c0_45 = arith.constant 0 : index
    %c0_46 = arith.constant 0 : index
    %95 = vector.load %arg6[%c0_45, %c0_46] : memref<256x128xbf16, #tpu.memory_space<vmem>>, vector<256x128xbf16>
    %cst_47 = arith.constant dense<0.000000e+00> : vector<16x128xf32>
    %96 = tpu.matmul %94, %95, %cst_47 {dimension_numbers = #tpu.dot_dimension_numbers<[1], [0], [0], [1], [0, 0, 1, 1], [], []>} : vector<16x256xbf16>, vector<256x128xbf16>, vector<16x128xf32> -> vector<16x128xf32>
    %c0_48 = arith.constant 0 : index
    %c0_49 = arith.constant 0 : index
    %97 = vector.load %arg7[%c0_48, %c0_49] : memref<1x128xf32, #tpu.memory_space<vmem>>, vector<1x128xf32>
    %98 = vector.broadcast %97 : vector<1x128xf32> to vector<16x128xf32>
    %99 = arith.addf %96, %98 : vector<16x128xf32>
    %cst_50 = arith.constant 0.000000e+00 : f32
    %100 = vector.broadcast %cst_50 : f32 to vector<16x128xf32>
    %101 = arith.maximumf %99, %100 : vector<16x128xf32>
    %102 = arith.truncf %101 : vector<16x128xf32> to vector<16x128xbf16>
    %c0_51 = arith.constant 0 : index
    %c0_52 = arith.constant 0 : index
    %103 = vector.load %arg8[%c0_51, %c0_52] : memref<128x128xbf16, #tpu.memory_space<vmem>>, vector<128x128xbf16>
    %cst_53 = arith.constant dense<0.000000e+00> : vector<16x128xf32>
    %104 = tpu.matmul %102, %103, %cst_53 {dimension_numbers = #tpu.dot_dimension_numbers<[1], [0], [0], [1], [0, 0, 1, 1], [], []>} : vector<16x128xbf16>, vector<128x128xbf16>, vector<16x128xf32> -> vector<16x128xf32>
    %c0_54 = arith.constant 0 : index
    %c0_55 = arith.constant 0 : index
    %105 = vector.load %arg9[%c0_54, %c0_55] : memref<1x128xf32, #tpu.memory_space<vmem>>, vector<1x128xf32>
    %106 = vector.broadcast %105 : vector<1x128xf32> to vector<16x128xf32>
    %107 = arith.addf %104, %106 : vector<16x128xf32>
    %cst_56 = arith.constant 0.000000e+00 : f32
    %108 = vector.broadcast %cst_56 : f32 to vector<16x128xf32>
    %109 = arith.maximumf %107, %108 : vector<16x128xf32>
    %c0_57 = arith.constant 0 : index
    %c0_58 = arith.constant 0 : index
    %110 = vector.load %arg10[%c0_57, %c0_58] : memref<16x128xf32, #tpu.memory_space<vmem>>, vector<16x128xf32>
    tpu.vector_store %arg10[%c0_57, %c0_58], %109 {strides = array<i32>} : memref<16x128xf32, #tpu.memory_space<vmem>>, vector<16x128xf32>,
    return
  }
  func.func @transform_0(%arg0: i32) -> (i32, i32) {
    %c0_i32 = arith.constant 0 : i32
    %c0_i32_0 = arith.constant 0 : i32
    return %arg0, %c0_i32 : i32, i32
  }
  func.func @transform_1(%arg0: i32) -> (i32, i32) {
    %c0_i32 = arith.constant 0 : i32
    %c0_i32_0 = arith.constant 0 : i32
    %c0_i32_1 = arith.constant 0 : i32
    return %c0_i32, %c0_i32_0 : i32, i32
  }
  func.func @transform_2(%arg0: i32) -> (i32, i32) {
    %c0_i32 = arith.constant 0 : i32
    %c0_i32_0 = arith.constant 0 : i32
    %c0_i32_1 = arith.constant 0 : i32
    return %c0_i32, %c0_i32_0 : i32, i32
  }
  func.func @transform_3(%arg0: i32) -> (i32, i32) {
    %c0_i32 = arith.constant 0 : i32
    %c0_i32_0 = arith.constant 0 : i32
    %c0_i32_1 = arith.constant 0 : i32
    return %c0_i32, %c0_i32_0 : i32, i32
  }
  func.func @transform_4(%arg0: i32) -> (i32, i32) {
    %c0_i32 = arith.constant 0 : i32
    %c0_i32_0 = arith.constant 0 : i32
    %c0_i32_1 = arith.constant 0 : i32
    return %c0_i32, %c0_i32_0 : i32, i32
  }
  func.func @transform_5(%arg0: i32) -> (i32, i32) {
    %c0_i32 = arith.constant 0 : i32
    %c0_i32_0 = arith.constant 0 : i32
    %c0_i32_1 = arith.constant 0 : i32
    return %c0_i32, %c0_i32_0 : i32, i32
  }
  func.func @transform_6(%arg0: i32) -> (i32, i32) {
    %c0_i32 = arith.constant 0 : i32
    %c0_i32_0 = arith.constant 0 : i32
    %c0_i32_1 = arith.constant 0 : i32
    return %c0_i32, %c0_i32_0 : i32, i32
  }
  func.func @transform_7(%arg0: i32) -> (i32, i32) {
    %c0_i32 = arith.constant 0 : i32
    %c0_i32_0 = arith.constant 0 : i32
    %c0_i32_1 = arith.constant 0 : i32
    return %c0_i32, %c0_i32_0 : i32, i32
  }
  func.func @transform_8(%arg0: i32) -> (i32, i32) {
    %c0_i32 = arith.constant 0 : i32
    %c0_i32_0 = arith.constant 0 : i32
    %c0_i32_1 = arith.constant 0 : i32
    return %c0_i32, %c0_i32_0 : i32, i32
  }
  func.func @transform_9(%arg0: i32) -> (i32, i32) {
    %c0_i32 = arith.constant 0 : i32
    %c0_i32_0 = arith.constant 0 : i32
    return %arg0, %c0_i32 : i32, i32
  }
}

</mosaic_0001>

<llo_original>
// kernel: encoder_forward.1
$region0: #{encoder_forward.1}
  #allocation0 [shape = 'u32[]', space=smem, size = 0x4, offset = 0x4, fixed_abs, tag = 'smem constant byte address 0x4 - core index']
  #allocation1 [shape = 'u32[144,128]{1,0:T(1,128)}', space=vmem, size = 0x12000, scoped, tag = 'internal scratch']
  %s0 = inlined_call_operand.vmem [shape: bf16[16,896], index: 0, kind: input, shape index: {}]
  %s1 = inlined_call_operand.vmem [shape: bf16[144,128], index: 1, kind: input, shape index: {}]
  %s2 = inlined_call_operand.vmem [shape: f32[1,128], index: 2, kind: input, shape index: {}]
  %s3 = inlined_call_operand.hbm [shape: bf16[1536,256], index: 3, kind: input, shape index: {}]
  %s4 = inlined_call_operand.vmem [shape: f32[1,256], index: 4, kind: input, shape index: {}]
  %s5 = inlined_call_operand.vmem [shape: bf16[256,128], index: 5, kind: input, shape index: {}]
  %s6 = inlined_call_operand.vmem [shape: f32[1,128], index: 6, kind: input, shape index: {}]
  %s7 = inlined_call_operand.hbm [shape: bf16[128,128], index: 7, kind: input, shape index: {}]
  %s8 = inlined_call_operand.vmem [shape: f32[1,128], index: 8, kind: input, shape index: {}]
  %s9 = inlined_call_operand.vmem [shape: f32[16,128], index: 9, kind: output, shape index: {}]
  %s10 = sld [smem:[#allocation0]]
  $region54: #{encoder_forward.1} parent=0
    _
  %s12 = ssub.s32 1, %s10
  %s13 = scalar_select 0, %s12, %s10
  $region1: #{encoder_forward.1} parent=0
    #allocation2 [shape = 'u8[786432]{0}', space=vmem, size = 0xc0000, scoped, tag = 'input window, operand 3, single buffered']
    #allocation3 [shape = 's32[1]{0}', space=sflag, size = 0x4, scoped, tag = 'scoped memory for encoder_forward.1']
    #allocation4 [shape = 'u8[32768]{0}', space=vmem, size = 0x8000, scoped, tag = 'input window, operand 7, single buffered']
    #allocation5 [shape = 's32[1]{0}', space=sflag, size = 0x4, scoped, tag = 'scoped memory for encoder_forward.1']
    %14 = vsyncpa [#allocation3], 0
    %15 = vsyncpa [#allocation5], 0
    // Predicated region
    $region2: #{encoder_forward.1} parent=1 // pred_check
      _
    $region3: #{encoder_forward.1} parent=1 // pred_check_branch
      %17 = sbr.rel (0) target = $region5
    $region4: #{encoder_forward.1} parent=1 // pred_region
      _
    $region5: #{encoder_forward.1} parent=1 // pred_fallthru
      _
    // Predicated region
    $region6: #{encoder_forward.1} parent=1 // pred_check
      _
    $region7: #{encoder_forward.1} parent=1 // pred_check_branch
      %19 = sbr.rel (0) target = $region9
    $region8: #{encoder_forward.1} parent=1 // pred_region
      _
    $region9: #{encoder_forward.1} parent=1 // pred_fallthru
      _
    // Predicated region
    $region10: #{encoder_forward.1} parent=1 // pred_check
      _
    $region11: #{encoder_forward.1} parent=1 // pred_check_branch
      %21 = sbr.rel (0) target = $region13
    $region12: #{encoder_forward.1} parent=1 // pred_region
      _
    $region13: #{encoder_forward.1} parent=1 // pred_fallthru
      _
    // Predicated region
    $region14: #{encoder_forward.1} parent=1 // pred_check
      _
    $region15: #{encoder_forward.1} parent=1 // pred_check_branch
      %23 = sbr.rel (0) target = $region17
    $region16: #{encoder_forward.1} parent=1 // pred_region
      %s25 = ssub.s32 24576, 24576
      %26 = vsyncadd [#allocation3], %s25
      %s27 = sshll.u32 [#allocation2], 4
      %s28 = int_to_ptr.vmem [resolvable:$true] %s27
      %33 = dma.hbm_to_vmem [thread:$0]  %s3, 24576, %s28, [#allocation3], 128, 128, 8
    $region17: #{encoder_forward.1} parent=1 // pred_fallthru
      _
    // Predicated region
    $region18: #{encoder_forward.1} parent=1 // pred_check
      _
    $region19: #{encoder_forward.1} parent=1 // pred_check_branch
      %35 = sbr.rel (0) target = $region21
    $region20: #{encoder_forward.1} parent=1 // pred_region
      _
    $region21: #{encoder_forward.1} parent=1 // pred_fallthru
      _
    // Predicated region
    $region22: #{encoder_forward.1} parent=1 // pred_check
      _
    $region23: #{encoder_forward.1} parent=1 // pred_check_branch
      %37 = sbr.rel (0) target = $region25
    $region24: #{encoder_forward.1} parent=1 // pred_region
      _
    $region25: #{encoder_forward.1} parent=1 // pred_fallthru
      _
    // Predicated region
    $region26: #{encoder_forward.1} parent=1 // pred_check
      _
    $region27: #{encoder_forward.1} parent=1 // pred_check_branch
      %39 = sbr.rel (0) target = $region29
    $region28: #{encoder_forward.1} parent=1 // pred_region
      _
    $region29: #{encoder_forward.1} parent=1 // pred_fallthru
      _
    // Predicated region
    $region30: #{encoder_forward.1} parent=1 // pred_check
      _
    $region31: #{encoder_forward.1} parent=1 // pred_check_branch
      %41 = sbr.rel (0) target = $region33
    $region32: #{encoder_forward.1} parent=1 // pred_region
      %s43 = ssub.s32 1024, 1024
      %44 = vsyncadd [#allocation5], %s43
      %s45 = sshll.u32 [#allocation4], 4
      %s46 = int_to_ptr.vmem [resolvable:$true] %s45
      %51 = dma.hbm_to_vmem [thread:$0]  %s7, 1024, %s46, [#allocation5], 64, 64, 4
    $region33: #{encoder_forward.1} parent=1 // pred_fallthru
      _
    // Predicated region
    $region34: #{encoder_forward.1} parent=1 // pred_check
      _
    $region35: #{encoder_forward.1} parent=1 // pred_check_branch
      %53 = sbr.rel (0) target = $region37
    $region36: #{encoder_forward.1} parent=1 // pred_region
      _
    $region37: #{encoder_forward.1} parent=1 // pred_fallthru
      _
    // Predicated region
    $region38: #{encoder_forward.1} parent=1 // pred_check
      _
    $region39: #{encoder_forward.1} parent=1 // pred_check_branch
      %55 = sbr.rel (0) target = $region41
    $region40: #{encoder_forward.1} parent=1 // pred_region
      %56 = dma.done [#allocation3], 24576
    $region41: #{encoder_forward.1} parent=1 // pred_fallthru
      _
    // Predicated region
    $region42: #{encoder_forward.1} parent=1 // pred_check
      _
    $region43: #{encoder_forward.1} parent=1 // pred_check_branch
      %58 = sbr.rel (0) target = $region45
    $region44: #{encoder_forward.1} parent=1 // pred_region
      %59 = dma.done [#allocation5], 1024
    $region45: #{encoder_forward.1} parent=1 // pred_fallthru
      _
    %v61 = vld [vmem:[%s1] sm:$0xf]
    %v62 = vld [vmem:[%s1 + $0x4] sm:$0xf]
    %v63 = vld [vmem:[%s1 + $0x8] sm:$0xf]
    %v64 = vld [vmem:[%s1 + $0xc] sm:$0xf]
    %v65 = vld [vmem:[%s1 + $0x10] sm:$0xf]
    %v66 = vld [vmem:[%s1 + $0x14] sm:$0xf]
    %v67 = vld [vmem:[%s1 + $0x18] sm:$0xf]
    %v68 = vld [vmem:[%s1 + $0x1c] sm:$0xf]
    %v69 = vld [vmem:[%s1 + $0x20] sm:$0xf]
    %v70 = vld [vmem:[%s1 + $0x24] sm:$0xf]
    %v71 = vld [vmem:[%s1 + $0x28] sm:$0xf]
    %v72 = vld [vmem:[%s1 + $0x2c] sm:$0xf]
    %v73 = vld [vmem:[%s1 + $0x30] sm:$0xf]
    %v74 = vld [vmem:[%s1 + $0x34] sm:$0xf]
    %v75 = vld [vmem:[%s1 + $0x38] sm:$0xf]
    %v76 = vld [vmem:[%s1 + $0x3c] sm:$0xf]
    %v77 = vld [vmem:[%s1 + $0x40] sm:$0xf]
    %v78 = vld [vmem:[%s1 + $0x44] sm:$0xf]
    %v79 = vld [vmem:[%s2] sm:$0x1]
    %v80 = vld [vmem:[%s0] sm:$0xff]
    %v81 = vld [vmem:[%s0 + $0x1c] sm:$0xff]
    %v83 = vlaneseq
    %v84 = vshrl.u32 %v83, 7
    %v85 = vsub.s32 0, %v84
    %v86 = vrot.slane %v79, %v85
    %v90 = vunpack.c.l.b16 %v80
    %v91 = vunpack.c.h.b16 %v80
    %v92 = vunpack.c.l.b16 %v81
    %v93 = vunpack.c.h.b16 %v81
    %v94 = vpack.c.b16 %v92, %v90
    %v95 = vpack.c.b16 %v93, %v91
    %v115 = vunpack.c.l.b16 %v61
    %v116 = vunpack.c.l.b16 %v62
    %v117 = vunpack.c.l.b16 %v63
    %v118 = vunpack.c.l.b16 %v64
    %v119 = vunpack.c.l.b16 %v65
    %v120 = vunpack.c.l.b16 %v66
    %v121 = vunpack.c.l.b16 %v67
    %v122 = vunpack.c.l.b16 %v68
    %v123 = vunpack.c.l.b16 %v69
    %v124 = vunpack.c.l.b16 %v70
    %v125 = vunpack.c.l.b16 %v71
    %v126 = vunpack.c.l.b16 %v72
    %v127 = vunpack.c.l.b16 %v73
    %v128 = vunpack.c.l.b16 %v74
    %v129 = vunpack.c.l.b16 %v75
    %v130 = vunpack.c.l.b16 %v76
    %v131 = vunpack.c.l.b16 %v77
    %v132 = vunpack.c.l.b16 %v78
    %v133 = vpack.c.b16 %v116, %v115
    %v134 = vpack.c.b16 %v118, %v117
    %v135 = vpack.c.b16 %v120, %v119
    %v136 = vpack.c.b16 %v122, %v121
    %v137 = vpack.c.b16 %v124, %v123
    %v138 = vpack.c.b16 %v126, %v125
    %v139 = vpack.c.b16 %v128, %v127
    %v140 = vpack.c.b16 %v130, %v129
    %v141 = vpack.c.b16 %v132, %v131
    %vm151 = vcmask 130048
    %v153 = vsel %vm151, %v95, 0
    %155 = vmatprep.subr.bf16.mxu0 0
    %156 = vmatpush1.bf16.msra.mxu0 %v133
    %157 = vmatprep.subr.bf16.mxu0 0
    %158 = vmatpush1.bf16.msra.mxu0 %v134
    %159 = vmatprep.subr.bf16.mxu0 0
    %160 = vmatpush1.bf16.msra.mxu0 %v135
    %161 = vmatprep.subr.bf16.mxu0 0
    %162 = vmatpush1.bf16.msra.mxu0 %v136
    %163 = vmatprep.subr.bf16.mxu0 0
    %164 = vmatpush1.bf16.msra.mxu0 %v137
    %165 = vmatprep.subr.bf16.mxu0 0
    %166 = vmatpush1.bf16.msra.mxu0 %v138
    %167 = vmatprep.subr.bf16.mxu0 0
    %168 = vmatpush1.bf16.msra.mxu0 %v139
    %169 = vmatprep.subr.bf16.mxu0 0
    %170 = vmatpush1.bf16.msra.mxu0 %v140
    %171 = vmatprep.subr.bf16.mxu0 0
    %172 = vmatpush1.bf16.msra.mxu0 %v141
    %173 = vmatprep.subr.bf16.mxu0 0
    %174 = vmatpush1.bf16.msra.mxu0 0
    %175 = vmatprep.subr.bf16.mxu0 0
    %176 = vmatpush1.bf16.msra.mxu0 0
    %177 = vmatprep.subr.bf16.mxu0 0
    %178 = vmatpush1.bf16.msra.mxu0 0
    %179 = vmatprep.subr.bf16.mxu0 0
    %180 = vmatpush1.bf16.msra.mxu0 0
    %181 = vmatprep.subr.bf16.mxu0 0
    %182 = vmatpush1.bf16.msra.mxu0 0
    %183 = vmatprep.subr.bf16.mxu0 0
    %184 = vmatpush1.bf16.msra.mxu0 0
    %185 = vmatprep.subr.bf16.mxu0 0
    %186 = vmatpush1.bf16.msra.mxu0 0
    %187 = vmatprep.mubr.bf16.mxu0 %v153
    %188 = vmatmul.mubr.bf16.gmra.mrb[0].mxu0 %v94
    %v189 = vpop.f32.mrb[0].mxu0
    %v190 = vadd.f32 %v86, %v189
    %v191 = vpop.f32.mrb[0].mxu0
    %v192 = vpop.f32.mrb[0].mxu0
    %v193 = vadd.f32 %v86, %v192
    %v194 = vpop.f32.mrb[0].mxu0
    %195 = vdwg.mxu0
    %v196 = vmax.f32 %v190, 0.0
    %v197 = vmax.f32 %v193, 0.0
    %v198 = vpack.c.bf16 %v197, %v196
    %199 = vrot.lane.b32.xlu0 %v94, 72
    %v200 = vpop.permute.xlu0 %199
    %201 = vrot.lane.b32.xlu0 %v95, 72
    %v202 = vpop.permute.xlu0 %201
    %vm203 = vcmask 588800
    %v204 = vsel %vm203, %v200, %v202
    %v207 = vsel %vm151, %v202, 0
    %209 = vmatprep.subr.bf16.mxu0 0
    %210 = vmatpush1.bf16.msra.mxu0 %v133
    %211 = vmatprep.subr.bf16.mxu0 0
    %212 = vmatpush1.bf16.msra.mxu0 %v134
    %213 = vmatprep.subr.bf16.mxu0 0
    %214 = vmatpush1.bf16.msra.mxu0 %v135
    %215 = vmatprep.subr.bf16.mxu0 0
    %216 = vmatpush1.bf16.msra.mxu0 %v136
    %217 = vmatprep.subr.bf16.mxu0 0
    %218 = vmatpush1.bf16.msra.mxu0 %v137
    %219 = vmatprep.subr.bf16.mxu0 0
    %220 = vmatpush1.bf16.msra.mxu0 %v138
    %221 = vmatprep.subr.bf16.mxu0 0
    %222 = vmatpush1.bf16.msra.mxu0 %v139
    %223 = vmatprep.subr.bf16.mxu0 0
    %224 = vmatpush1.bf16.msra.mxu0 %v140
    %225 = vmatprep.subr.bf16.mxu0 0
    %226 = vmatpush1.bf16.msra.mxu0 %v141
    %227 = vmatprep.subr.bf16.mxu0 0
    %228 = vmatpush1.bf16.msra.mxu0 0
    %229 = vmatprep.subr.bf16.mxu0 0
    %230 = vmatpush1.bf16.msra.mxu0 0
    %231 = vmatprep.subr.bf16.mxu0 0
    %232 = vmatpush1.bf16.msra.mxu0 0
    %233 = vmatprep.subr.bf16.mxu0 0
    %234 = vmatpush1.bf16.msra.mxu0 0
    %235 = vmatprep.subr.bf16.mxu0 0
    %236 = vmatpush1.bf16.msra.mxu0 0
    %237 = vmatprep.subr.bf16.mxu0 0
    %238 = vmatpush1.bf16.msra.mxu0 0
    %239 = vmatprep.subr.bf16.mxu0 0
    %240 = vmatpush1.bf16.msra.mxu0 0
    %241 = vmatprep.mubr.bf16.mxu0 %v207
    %242 = vmatmul.mubr.bf16.gmra.mrb[0].mxu0 %v204
    %v243 = vpop.f32.mrb[0].mxu0
    %v244 = vadd.f32 %v86, %v243
    %v245 = vpop.f32.mrb[0].mxu0
    %v246 = vpop.f32.mrb[0].mxu0
    %v247 = vadd.f32 %v86, %v246
    %v248 = vpop.f32.mrb[0].mxu0
    %249 = vdwg.mxu0
    %v250 = vmax.f32 %v244, 0.0
    %v251 = vmax.f32 %v247, 0.0
    %v252 = vpack.c.bf16 %v251, %v250
    %253 = vrot.lane.b32.xlu0 %v94, 16
    %v254 = vpop.permute.xlu0 %253
    %255 = vrot.lane.b32.xlu0 %v95, 16
    %v256 = vpop.permute.xlu0 %255
    %vm257 = vcmask 130048
    %v258 = vsel %vm257, %v254, %v256
    %v261 = vsel %vm151, %v256, 0
    %263 = vmatprep.subr.bf16.mxu0 0
    %264 = vmatpush1.bf16.msra.mxu0 %v133
    %265 = vmatprep.subr.bf16.mxu0 0
    %266 = vmatpush1.bf16.msra.mxu0 %v134
    %267 = vmatprep.subr.bf16.mxu0 0
    %268 = vmatpush1.bf16.msra.mxu0 %v135
    %269 = vmatprep.subr.bf16.mxu0 0
    %270 = vmatpush1.bf16.msra.mxu0 %v136
    %271 = vmatprep.subr.bf16.mxu0 0
    %272 = vmatpush1.bf16.msra.mxu0 %v137
    %273 = vmatprep.subr.bf16.mxu0 0
    %274 = vmatpush1.bf16.msra.mxu0 %v138
    %275 = vmatprep.subr.bf16.mxu0 0
    %276 = vmatpush1.bf16.msra.mxu0 %v139
    %277 = vmatprep.subr.bf16.mxu0 0
    %278 = vmatpush1.bf16.msra.mxu0 %v140
    %279 = vmatprep.subr.bf16.mxu0 0
    %280 = vmatpush1.bf16.msra.mxu0 %v141
    %281 = vmatprep.subr.bf16.mxu0 0
    %282 = vmatpush1.bf16.msra.mxu0 0
    %283 = vmatprep.subr.bf16.mxu0 0
    %284 = vmatpush1.bf16.msra.mxu0 0
    %285 = vmatprep.subr.bf16.mxu0 0
    %286 = vmatpush1.bf16.msra.mxu0 0
    %287 = vmatprep.subr.bf16.mxu0 0
    %288 = vmatpush1.bf16.msra.mxu0 0
    %289 = vmatprep.subr.bf16.mxu0 0
    %290 = vmatpush1.bf16.msra.mxu0 0
    %291 = vmatprep.subr.bf16.mxu0 0
    %292 = vmatpush1.bf16.msra.mxu0 0
    %293 = vmatprep.subr.bf16.mxu0 0
    %294 = vmatpush1.bf16.msra.mxu0 0
    %295 = vmatprep.mubr.bf16.mxu0 %v261
    %296 = vmatmul.mubr.bf16.gmra.mrb[0].mxu0 %v258
    %v297 = vpop.f32.mrb[0].mxu0
    %v298 = vadd.f32 %v86, %v297
    %v299 = vpop.f32.mrb[0].mxu0
    %v300 = vpop.f32.mrb[0].mxu0
    %v301 = vadd.f32 %v86, %v300
    %v302 = vpop.f32.mrb[0].mxu0
    %303 = vdwg.mxu0
    %v304 = vmax.f32 %v298, 0.0
    %v305 = vmax.f32 %v301, 0.0
    %v306 = vpack.c.bf16 %v305, %v304
    %v307 = vld [vmem:[%s0 + $0x4] sm:$0xff]
    %v308 = vld [vmem:[%s0 + $0x20] sm:$0xff]
    %v311 = vunpack.c.l.b16 %v307
    %v312 = vunpack.c.h.b16 %v307
    %v313 = vunpack.c.l.b16 %v308
    %v314 = vunpack.c.h.b16 %v308
    %v315 = vpack.c.b16 %v313, %v311
    %v316 = vpack.c.b16 %v314, %v312
    %317 = vrot.lane.b32.xlu0 %v315, 88
    %v318 = vpop.permute.xlu0 %317
    %319 = vrot.lane.b32.xlu0 %v316, 88
    %v320 = vpop.permute.xlu0 %319
    %vm321 = vcmask 719872
    %v322 = vsel %vm321, %v318, %v320
    %v325 = vsel %vm151, %v320, 0
    %327 = vmatprep.subr.bf16.mxu0 0
    %328 = vmatpush1.bf16.msra.mxu0 %v133
    %329 = vmatprep.subr.bf16.mxu0 0
    %330 = vmatpush1.bf16.msra.mxu0 %v134
    %331 = vmatprep.subr.bf16.mxu0 0
    %332 = vmatpush1.bf16.msra.mxu0 %v135
    %333 = vmatprep.subr.bf16.mxu0 0
    %334 = vmatpush1.bf16.msra.mxu0 %v136
    %335 = vmatprep.subr.bf16.mxu0 0
    %336 = vmatpush1.bf16.msra.mxu0 %v137
    %337 = vmatprep.subr.bf16.mxu0 0
    %338 = vmatpush1.bf16.msra.mxu0 %v138
    %339 = vmatprep.subr.bf16.mxu0 0
    %340 = vmatpush1.bf16.msra.mxu0 %v139
    %341 = vmatprep.subr.bf16.mxu0 0
    %342 = vmatpush1.bf16.msra.mxu0 %v140
    %343 = vmatprep.subr.bf16.mxu0 0
    %344 = vmatpush1.bf16.msra.mxu0 %v141
    %345 = vmatprep.subr.bf16.mxu0 0
    %346 = vmatpush1.bf16.msra.mxu0 0
    %347 = vmatprep.subr.bf16.mxu0 0
    %348 = vmatpush1.bf16.msra.mxu0 0
    %349 = vmatprep.subr.bf16.mxu0 0
    %350 = vmatpush1.bf16.msra.mxu0 0
    %351 = vmatprep.subr.bf16.mxu0 0
    %352 = vmatpush1.bf16.msra.mxu0 0
    %353 = vmatprep.subr.bf16.mxu0 0
    %354 = vmatpush1.bf16.msra.mxu0 0
    %355 = vmatprep.subr.bf16.mxu0 0
    %356 = vmatpush1.bf16.msra.mxu0 0
    %357 = vmatprep.subr.bf16.mxu0 0
    %358 = vmatpush1.bf16.msra.mxu0 0
    %359 = vmatprep.mubr.bf16.mxu0 %v325
    %360 = vmatmul.mubr.bf16.gmra.mrb[0].mxu0 %v322
    %v361 = vpop.f32.mrb[0].mxu0
    %v362 = vadd.f32 %v86, %v361
    %v363 = vpop.f32.mrb[0].mxu0
    %v364 = vpop.f32.mrb[0].mxu0
    %v365 = vadd.f32 %v86, %v364
    %v366 = vpop.f32.mrb[0].mxu0
    %367 = vdwg.mxu0
    %v368 = vmax.f32 %v362, 0.0
    %v369 = vmax.f32 %v365, 0.0
    %v370 = vpack.c.bf16 %v369, %v368
    %371 = vrot.lane.b32.xlu0 %v315, 32
    %v372 = vpop.permute.xlu0 %371
    %373 = vrot.lane.b32.xlu0 %v316, 32
    %v374 = vpop.permute.xlu0 %373
    %vm375 = vcmask 261120
    %v376 = vsel %vm375, %v372, %v374
    %v379 = vsel %vm151, %v374, 0
    %381 = vmatprep.subr.bf16.mxu0 0
    %382 = vmatpush1.bf16.msra.mxu0 %v133
    %383 = vmatprep.subr.bf16.mxu0 0
    %384 = vmatpush1.bf16.msra.mxu0 %v134
    %385 = vmatprep.subr.bf16.mxu0 0
    %386 = vmatpush1.bf16.msra.mxu0 %v135
    %387 = vmatprep.subr.bf16.mxu0 0
    %388 = vmatpush1.bf16.msra.mxu0 %v136
    %389 = vmatprep.subr.bf16.mxu0 0
    %390 = vmatpush1.bf16.msra.mxu0 %v137
    %391 = vmatprep.subr.bf16.mxu0 0
    %392 = vmatpush1.bf16.msra.mxu0 %v138
    %393 = vmatprep.subr.bf16.mxu0 0
    %394 = vmatpush1.bf16.msra.mxu0 %v139
    %395 = vmatprep.subr.bf16.mxu0 0
    %396 = vmatpush1.bf16.msra.mxu0 %v140
    %397 = vmatprep.subr.bf16.mxu0 0
    %398 = vmatpush1.bf16.msra.mxu0 %v141
    %399 = vmatprep.subr.bf16.mxu0 0
    %400 = vmatpush1.bf16.msra.mxu0 0
    %401 = vmatprep.subr.bf16.mxu0 0
    %402 = vmatpush1.bf16.msra.mxu0 0
    %403 = vmatprep.subr.bf16.mxu0 0
    %404 = vmatpush1.bf16.msra.mxu0 0
    %405 = vmatprep.subr.bf16.mxu0 0
    %406 = vmatpush1.bf16.msra.mxu0 0
    %407 = vmatprep.subr.bf16.mxu0 0
    %408 = vmatpush1.bf16.msra.mxu0 0
    %409 = vmatprep.subr.bf16.mxu0 0
    %410 = vmatpush1.bf16.msra.mxu0 0
    %411 = vmatprep.subr.bf16.mxu0 0
    %412 = vmatpush1.bf16.msra.mxu0 0
    %413 = vmatprep.mubr.bf16.mxu0 %v379
    %414 = vmatmul.mubr.bf16.gmra.mrb[0].mxu0 %v376
    %v415 = vpop.f32.mrb[0].mxu0
    %v416 = vadd.f32 %v86, %v415
    %v417 = vpop.f32.mrb[0].mxu0
    %v418 = vpop.f32.mrb[0].mxu0
    %v419 = vadd.f32 %v86, %v418
    %v420 = vpop.f32.mrb[0].mxu0
    %421 = vdwg.mxu0
    %v422 = vmax.f32 %v416, 0.0
    %v423 = vmax.f32 %v419, 0.0
    %v424 = vpack.c.bf16 %v423, %v422
    %v425 = vld [vmem:[%s0 + $0x8] sm:$0xff]
    %v426 = vld [vmem:[%s0 + $0x24] sm:$0xff]
    %v429 = vunpack.c.l.b16 %v425
    %v430 = vunpack.c.h.b16 %v425
    %v431 = vunpack.c.l.b16 %v426
    %v432 = vunpack.c.h.b16 %v426
    %v433 = vpack.c.b16 %v431, %v429
    %v434 = vpack.c.b16 %v432, %v430
    %435 = vrot.lane.b32.xlu0 %v433, 104
    %v436 = vpop.permute.xlu0 %435
    %437 = vrot.lane.b32.xlu0 %v434, 104
    %v438 = vpop.permute.xlu0 %437
    %vm439 = vcmask 850944
    %v440 = vsel %vm439, %v436, %v438
    %v443 = vsel %vm151, %v438, 0
    %445 = vmatprep.subr.bf16.mxu0 0
    %446 = vmatpush1.bf16.msra.mxu0 %v133
    %447 = vmatprep.subr.bf16.mxu0 0
    %448 = vmatpush1.bf16.msra.mxu0 %v134
    %449 = vmatprep.subr.bf16.mxu0 0
    %450 = vmatpush1.bf16.msra.mxu0 %v135
    %451 = vmatprep.subr.bf16.mxu0 0
    %452 = vmatpush1.bf16.msra.mxu0 %v136
    %453 = vmatprep.subr.bf16.mxu0 0
    %454 = vmatpush1.bf16.msra.mxu0 %v137
    %455 = vmatprep.subr.bf16.mxu0 0
    %456 = vmatpush1.bf16.msra.mxu0 %v138
    %457 = vmatprep.subr.bf16.mxu0 0
    %458 = vmatpush1.bf16.msra.mxu0 %v139
    %459 = vmatprep.subr.bf16.mxu0 0
    %460 = vmatpush1.bf16.msra.mxu0 %v140
    %461 = vmatprep.subr.bf16.mxu0 0
    %462 = vmatpush1.bf16.msra.mxu0 %v141
    %463 = vmatprep.subr.bf16.mxu0 0
    %464 = vmatpush1.bf16.msra.mxu0 0
    %465 = vmatprep.subr.bf16.mxu0 0
    %466 = vmatpush1.bf16.msra.mxu0 0
    %467 = vmatprep.subr.bf16.mxu0 0
    %468 = vmatpush1.bf16.msra.mxu0 0
    %469 = vmatprep.subr.bf16.mxu0 0
    %470 = vmatpush1.bf16.msra.mxu0 0
    %471 = vmatprep.subr.bf16.mxu0 0
    %472 = vmatpush1.bf16.msra.mxu0 0
    %473 = vmatprep.subr.bf16.mxu0 0
    %474 = vmatpush1.bf16.msra.mxu0 0
    %475 = vmatprep.subr.bf16.mxu0 0
    %476 = vmatpush1.bf16.msra.mxu0 0
    %477 = vmatprep.mubr.bf16.mxu0 %v443
    %478 = vmatmul.mubr.bf16.gmra.mrb[0].mxu0 %v440
    %v479 = vpop.f32.mrb[0].mxu0
    %v480 = vadd.f32 %v86, %v479
    %v481 = vpop.f32.mrb[0].mxu0
    %v482 = vpop.f32.mrb[0].mxu0
    %v483 = vadd.f32 %v86, %v482
    %v484 = vpop.f32.mrb[0].mxu0
    %485 = vdwg.mxu0
    %v486 = vmax.f32 %v480, 0.0
    %v487 = vmax.f32 %v483, 0.0
    %v488 = vpack.c.bf16 %v487, %v486
    %489 = vrot.lane.b32.xlu0 %v433, 48
    %v490 = vpop.permute.xlu0 %489
    %491 = vrot.lane.b32.xlu0 %v434, 48
    %v492 = vpop.permute.xlu0 %491
    %vm493 = vcmask 392192
    %v494 = vsel %vm493, %v490, %v492
    %v497 = vsel %vm151, %v492, 0
    %499 = vmatprep.subr.bf16.mxu0 0
    %500 = vmatpush1.bf16.msra.mxu0 %v133
    %501 = vmatprep.subr.bf16.mxu0 0
    %502 = vmatpush1.bf16.msra.mxu0 %v134
    %503 = vmatprep.subr.bf16.mxu0 0
    %504 = vmatpush1.bf16.msra.mxu0 %v135
    %505 = vmatprep.subr.bf16.mxu0 0
    %506 = vmatpush1.bf16.msra.mxu0 %v136
    %507 = vmatprep.subr.bf16.mxu0 0
    %508 = vmatpush1.bf16.msra.mxu0 %v137
    %509 = vmatprep.subr.bf16.mxu0 0
    %510 = vmatpush1.bf16.msra.mxu0 %v138
    %511 = vmatprep.subr.bf16.mxu0 0
    %512 = vmatpush1.bf16.msra.mxu0 %v139
    %513 = vmatprep.subr.bf16.mxu0 0
    %514 = vmatpush1.bf16.msra.mxu0 %v140
    %515 = vmatprep.subr.bf16.mxu0 0
    %516 = vmatpush1.bf16.msra.mxu0 %v141
    %517 = vmatprep.subr.bf16.mxu0 0
    %518 = vmatpush1.bf16.msra.mxu0 0
    %519 = vmatprep.subr.bf16.mxu0 0
    %520 = vmatpush1.bf16.msra.mxu0 0
    %521 = vmatprep.subr.bf16.mxu0 0
    %522 = vmatpush1.bf16.msra.mxu0 0
    %523 = vmatprep.subr.bf16.mxu0 0
    %524 = vmatpush1.bf16.msra.mxu0 0
    %525 = vmatprep.subr.bf16.mxu0 0
    %526 = vmatpush1.bf16.msra.mxu0 0
    %527 = vmatprep.subr.bf16.mxu0 0
    %528 = vmatpush1.bf16.msra.mxu0 0
    %529 = vmatprep.subr.bf16.mxu0 0
    %530 = vmatpush1.bf16.msra.mxu0 0
    %531 = vmatprep.mubr.bf16.mxu0 %v497
    %532 = vmatmul.mubr.bf16.gmra.mrb[0].mxu0 %v494
    %v533 = vpop.f32.mrb[0].mxu0
    %v534 = vadd.f32 %v86, %v533
    %v535 = vpop.f32.mrb[0].mxu0
    %v536 = vpop.f32.mrb[0].mxu0
    %v537 = vadd.f32 %v86, %v536
    %v538 = vpop.f32.mrb[0].mxu0
    %539 = vdwg.mxu0
    %v540 = vmax.f32 %v534, 0.0
    %v541 = vmax.f32 %v537, 0.0
    %v542 = vpack.c.bf16 %v541, %v540
    %v543 = vld [vmem:[%s0 + $0xc] sm:$0xff]
    %v544 = vld [vmem:[%s0 + $0x28] sm:$0xff]
    %v547 = vunpack.c.l.b16 %v543
    %v548 = vunpack.c.h.b16 %v543
    %v549 = vunpack.c.l.b16 %v544
    %v550 = vunpack.c.h.b16 %v544
    %v551 = vpack.c.b16 %v549, %v547
    %v552 = vpack.c.b16 %v550, %v548
    %553 = vrot.lane.b32.xlu0 %v551, 120
    %v554 = vpop.permute.xlu0 %553
    %555 = vrot.lane.b32.xlu0 %v552, 120
    %v556 = vpop.permute.xlu0 %555
    %vm557 = vcmask 982016
    %v558 = vsel %vm557, %v554, %v556
    %v561 = vsel %vm151, %v556, 0
    %563 = vmatprep.subr.bf16.mxu0 0
    %564 = vmatpush1.bf16.msra.mxu0 %v133
    %565 = vmatprep.subr.bf16.mxu0 0
    %566 = vmatpush1.bf16.msra.mxu0 %v134
    %567 = vmatprep.subr.bf16.mxu0 0
    %568 = vmatpush1.bf16.msra.mxu0 %v135
    %569 = vmatprep.subr.bf16.mxu0 0
    %570 = vmatpush1.bf16.msra.mxu0 %v136
    %571 = vmatprep.subr.bf16.mxu0 0
    %572 = vmatpush1.bf16.msra.mxu0 %v137
    %573 = vmatprep.subr.bf16.mxu0 0
    %574 = vmatpush1.bf16.msra.mxu0 %v138
    %575 = vmatprep.subr.bf16.mxu0 0
    %576 = vmatpush1.bf16.msra.mxu0 %v139
    %577 = vmatprep.subr.bf16.mxu0 0
    %578 = vmatpush1.bf16.msra.mxu0 %v140
    %579 = vmatprep.subr.bf16.mxu0 0
    %580 = vmatpush1.bf16.msra.mxu0 %v141
    %581 = vmatprep.subr.bf16.mxu0 0
    %582 = vmatpush1.bf16.msra.mxu0 0
    %583 = vmatprep.subr.bf16.mxu0 0
    %584 = vmatpush1.bf16.msra.mxu0 0
    %585 = vmatprep.subr.bf16.mxu0 0
    %586 = vmatpush1.bf16.msra.mxu0 0
    %587 = vmatprep.subr.bf16.mxu0 0
    %588 = vmatpush1.bf16.msra.mxu0 0
    %589 = vmatprep.subr.bf16.mxu0 0
    %590 = vmatpush1.bf16.msra.mxu0 0
    %591 = vmatprep.subr.bf16.mxu0 0
    %592 = vmatpush1.bf16.msra.mxu0 0
    %593 = vmatprep.subr.bf16.mxu0 0
    %594 = vmatpush1.bf16.msra.mxu0 0
    %595 = vmatprep.mubr.bf16.mxu0 %v561
    %596 = vmatmul.mubr.bf16.gmra.mrb[0].mxu0 %v558
    %v597 = vpop.f32.mrb[0].mxu0
    %v598 = vadd.f32 %v86, %v597
    %v599 = vpop.f32.mrb[0].mxu0
    %v600 = vpop.f32.mrb[0].mxu0
    %v601 = vadd.f32 %v86, %v600
    %v602 = vpop.f32.mrb[0].mxu0
    %603 = vdwg.mxu0
    %v604 = vmax.f32 %v598, 0.0
    %v605 = vmax.f32 %v601, 0.0
    %v606 = vpack.c.bf16 %v605, %v604
    %607 = vrot.lane.b32.xlu0 %v551, 64
    %v608 = vpop.permute.xlu0 %607
    %609 = vrot.lane.b32.xlu0 %v552, 64
    %v610 = vpop.permute.xlu0 %609
    %vm611 = vcmask 523264
    %v612 = vsel %vm611, %v608, %v610
    %v615 = vsel %vm151, %v610, 0
    %617 = vmatprep.subr.bf16.mxu0 0
    %618 = vmatpush1.bf16.msra.mxu0 %v133
    %619 = vmatprep.subr.bf16.mxu0 0
    %620 = vmatpush1.bf16.msra.mxu0 %v134
    %621 = vmatprep.subr.bf16.mxu0 0
    %622 = vmatpush1.bf16.msra.mxu0 %v135
    %623 = vmatprep.subr.bf16.mxu0 0
    %624 = vmatpush1.bf16.msra.mxu0 %v136
    %625 = vmatprep.subr.bf16.mxu0 0
    %626 = vmatpush1.bf16.msra.mxu0 %v137
    %627 = vmatprep.subr.bf16.mxu0 0
    %628 = vmatpush1.bf16.msra.mxu0 %v138
    %629 = vmatprep.subr.bf16.mxu0 0
    %630 = vmatpush1.bf16.msra.mxu0 %v139
    %631 = vmatprep.subr.bf16.mxu0 0
    %632 = vmatpush1.bf16.msra.mxu0 %v140
    %633 = vmatprep.subr.bf16.mxu0 0
    %634 = vmatpush1.bf16.msra.mxu0 %v141
    %635 = vmatprep.subr.bf16.mxu0 0
    %636 = vmatpush1.bf16.msra.mxu0 0
    %637 = vmatprep.subr.bf16.mxu0 0
    %638 = vmatpush1.bf16.msra.mxu0 0
    %639 = vmatprep.subr.bf16.mxu0 0
    %640 = vmatpush1.bf16.msra.mxu0 0
    %641 = vmatprep.subr.bf16.mxu0 0
    %642 = vmatpush1.bf16.msra.mxu0 0
    %643 = vmatprep.subr.bf16.mxu0 0
    %644 = vmatpush1.bf16.msra.mxu0 0
    %645 = vmatprep.subr.bf16.mxu0 0
    %646 = vmatpush1.bf16.msra.mxu0 0
    %647 = vmatprep.subr.bf16.mxu0 0
    %648 = vmatpush1.bf16.msra.mxu0 0
    %649 = vmatprep.mubr.bf16.mxu0 %v615
    %650 = vmatmul.mubr.bf16.gmra.mrb[0].mxu0 %v612
    %v651 = vpop.f32.mrb[0].mxu0
    %v652 = vadd.f32 %v86, %v651
    %v653 = vpop.f32.mrb[0].mxu0
    %v654 = vpop.f32.mrb[0].mxu0
    %v655 = vadd.f32 %v86, %v654
    %v656 = vpop.f32.mrb[0].mxu0
    %657 = vdwg.mxu0
    %v658 = vmax.f32 %v652, 0.0
    %v659 = vmax.f32 %v655, 0.0
    %v660 = vpack.c.bf16 %v659, %v658
    %v661 = vld [vmem:[%s0 + $0xc] sm:$0xff]
    %v662 = vld [vmem:[%s0 + $0x14] sm:$0xf]
    %v663 = vld [vmem:[%s0 + $0x28] sm:$0xff]
    %v664 = vld [vmem:[%s0 + $0x30] sm:$0xf]
    %v669 = vunpack.c.l.b16 %v661
    %v670 = vunpack.c.h.b16 %v661
    %v671 = vunpack.c.l.b16 %v662
    %v672 = vunpack.c.l.b16 %v663
    %v673 = vunpack.c.h.b16 %v663
    %v674 = vunpack.c.l.b16 %v664
    %v675 = vpack.c.b16 %v672, %v669
    %v676 = vpack.c.b16 %v673, %v670
    %v677 = vpack.c.b16 %v674, %v671
    %678 = vrot.lane.b32.xlu0 %v675, 8
    %v679 = vpop.permute.xlu0 %678
    %680 = vrot.lane.b32.xlu0 %v676, 8
    %v681 = vpop.permute.xlu0 %680
    %682 = vrot.lane.b32.xlu0 %v677, 8
    %v683 = vpop.permute.xlu0 %682
    %vm684 = vcmask 64512
    %v685 = vsel %vm684, %v679, %v681
    %v686 = vsel %vm684, %v681, %v683
    %v689 = vsel %vm151, %v686, 0
    %691 = vmatprep.subr.bf16.mxu0 0
    %692 = vmatpush1.bf16.msra.mxu0 %v133
    %693 = vmatprep.subr.bf16.mxu0 0
    %694 = vmatpush1.bf16.msra.mxu0 %v134
    %695 = vmatprep.subr.bf16.mxu0 0
    %696 = vmatpush1.bf16.msra.mxu0 %v135
    %697 = vmatprep.subr.bf16.mxu0 0
    %698 = vmatpush1.bf16.msra.mxu0 %v136
    %699 = vmatprep.subr.bf16.mxu0 0
    %700 = vmatpush1.bf16.msra.mxu0 %v137
    %701 = vmatprep.subr.bf16.mxu0 0
    %702 = vmatpush1.bf16.msra.mxu0 %v138
    %703 = vmatprep.subr.bf16.mxu0 0
    %704 = vmatpush1.bf16.msra.mxu0 %v139
    %705 = vmatprep.subr.bf16.mxu0 0
    %706 = vmatpush1.bf16.msra.mxu0 %v140
    %707 = vmatprep.subr.bf16.mxu0 0
    %708 = vmatpush1.bf16.msra.mxu0 %v141
    %709 = vmatprep.subr.bf16.mxu0 0
    %710 = vmatpush1.bf16.msra.mxu0 0
    %711 = vmatprep.subr.bf16.mxu0 0
    %712 = vmatpush1.bf16.msra.mxu0 0
    %713 = vmatprep.subr.bf16.mxu0 0
    %714 = vmatpush1.bf16.msra.mxu0 0
    %715 = vmatprep.subr.bf16.mxu0 0
    %716 = vmatpush1.bf16.msra.mxu0 0
    %717 = vmatprep.subr.bf16.mxu0 0
    %718 = vmatpush1.bf16.msra.mxu0 0
    %719 = vmatprep.subr.bf16.mxu0 0
    %720 = vmatpush1.bf16.msra.mxu0 0
    %721 = vmatprep.subr.bf16.mxu0 0
    %722 = vmatpush1.bf16.msra.mxu0 0
    %723 = vmatprep.mubr.bf16.mxu0 %v689
    %724 = vmatmul.mubr.bf16.gmra.mrb[0].mxu0 %v685
    %v725 = vpop.f32.mrb[0].mxu0
    %v726 = vadd.f32 %v86, %v725
    %v727 = vpop.f32.mrb[0].mxu0
    %v728 = vpop.f32.mrb[0].mxu0
    %v729 = vadd.f32 %v86, %v728
    %v730 = vpop.f32.mrb[0].mxu0
    %731 = vdwg.mxu0
    %v732 = vmax.f32 %v726, 0.0
    %v733 = vmax.f32 %v729, 0.0
    %v734 = vpack.c.bf16 %v733, %v732
    %v735 = vld [vmem:[%s0 + $0x10] sm:$0xff]
    %v736 = vld [vmem:[%s0 + $0x2c] sm:$0xff]
    %v739 = vunpack.c.l.b16 %v735
    %v740 = vunpack.c.h.b16 %v735
    %v741 = vunpack.c.l.b16 %v736
    %v742 = vunpack.c.h.b16 %v736
    %v743 = vpack.c.b16 %v741, %v739
    %v744 = vpack.c.b16 %v742, %v740
    %745 = vrot.lane.b32.xlu0 %v743, 80
    %v746 = vpop.permute.xlu0 %745
    %747 = vrot.lane.b32.xlu0 %v744, 80
    %v748 = vpop.permute.xlu0 %747
    %vm749 = vcmask 654336
    %v750 = vsel %vm749, %v746, %v748
    %v753 = vsel %vm151, %v748, 0
    %755 = vmatprep.subr.bf16.mxu0 0
    %756 = vmatpush1.bf16.msra.mxu0 %v133
    %757 = vmatprep.subr.bf16.mxu0 0
    %758 = vmatpush1.bf16.msra.mxu0 %v134
    %759 = vmatprep.subr.bf16.mxu0 0
    %760 = vmatpush1.bf16.msra.mxu0 %v135
    %761 = vmatprep.subr.bf16.mxu0 0
    %762 = vmatpush1.bf16.msra.mxu0 %v136
    %763 = vmatprep.subr.bf16.mxu0 0
    %764 = vmatpush1.bf16.msra.mxu0 %v137
    %765 = vmatprep.subr.bf16.mxu0 0
    %766 = vmatpush1.bf16.msra.mxu0 %v138
    %767 = vmatprep.subr.bf16.mxu0 0
    %768 = vmatpush1.bf16.msra.mxu0 %v139
    %769 = vmatprep.subr.bf16.mxu0 0
    %770 = vmatpush1.bf16.msra.mxu0 %v140
    %771 = vmatprep.subr.bf16.mxu0 0
    %772 = vmatpush1.bf16.msra.mxu0 %v141
    %773 = vmatprep.subr.bf16.mxu0 0
    %774 = vmatpush1.bf16.msra.mxu0 0
    %775 = vmatprep.subr.bf16.mxu0 0
    %776 = vmatpush1.bf16.msra.mxu0 0
    %777 = vmatprep.subr.bf16.mxu0 0
    %778 = vmatpush1.bf16.msra.mxu0 0
    %779 = vmatprep.subr.bf16.mxu0 0
    %780 = vmatpush1.bf16.msra.mxu0 0
    %781 = vmatprep.subr.bf16.mxu0 0
    %782 = vmatpush1.bf16.msra.mxu0 0
    %783 = vmatprep.subr.bf16.mxu0 0
    %784 = vmatpush1.bf16.msra.mxu0 0
    %785 = vmatprep.subr.bf16.mxu0 0
    %786 = vmatpush1.bf16.msra.mxu0 0
    %787 = vmatprep.mubr.bf16.mxu0 %v753
    %788 = vmatmul.mubr.bf16.gmra.mrb[0].mxu0 %v750
    %v789 = vpop.f32.mrb[0].mxu0
    %v790 = vadd.f32 %v86, %v789
    %v791 = vpop.f32.mrb[0].mxu0
    %v792 = vpop.f32.mrb[0].mxu0
    %v793 = vadd.f32 %v86, %v792
    %v794 = vpop.f32.mrb[0].mxu0
    %795 = vdwg.mxu0
    %v796 = vmax.f32 %v790, 0.0
    %v797 = vmax.f32 %v793, 0.0
    %v798 = vpack.c.bf16 %v797, %v796
    %799 = vrot.lane.b32.xlu0 %v743, 24
    %v800 = vpop.permute.xlu0 %799
    %801 = vrot.lane.b32.xlu0 %v744, 24
    %v802 = vpop.permute.xlu0 %801
    %vm803 = vcmask 195584
    %v804 = vsel %vm803, %v800, %v802
    %v807 = vsel %vm151, %v802, 0
    %809 = vmatprep.subr.bf16.mxu0 0
    %810 = vmatpush1.bf16.msra.mxu0 %v133
    %811 = vmatprep.subr.bf16.mxu0 0
    %812 = vmatpush1.bf16.msra.mxu0 %v134
    %813 = vmatprep.subr.bf16.mxu0 0
    %814 = vmatpush1.bf16.msra.mxu0 %v135
    %815 = vmatprep.subr.bf16.mxu0 0
    %816 = vmatpush1.bf16.msra.mxu0 %v136
    %817 = vmatprep.subr.bf16.mxu0 0
    %818 = vmatpush1.bf16.msra.mxu0 %v137
    %819 = vmatprep.subr.bf16.mxu0 0
    %820 = vmatpush1.bf16.msra.mxu0 %v138
    %821 = vmatprep.subr.bf16.mxu0 0
    %822 = vmatpush1.bf16.msra.mxu0 %v139
    %823 = vmatprep.subr.bf16.mxu0 0
    %824 = vmatpush1.bf16.msra.mxu0 %v140
    %825 = vmatprep.subr.bf16.mxu0 0
    %826 = vmatpush1.bf16.msra.mxu0 %v141
    %827 = vmatprep.subr.bf16.mxu0 0
    %828 = vmatpush1.bf16.msra.mxu0 0
    %829 = vmatprep.subr.bf16.mxu0 0
    %830 = vmatpush1.bf16.msra.mxu0 0
    %831 = vmatprep.subr.bf16.mxu0 0
    %832 = vmatpush1.bf16.msra.mxu0 0
    %833 = vmatprep.subr.bf16.mxu0 0
    %834 = vmatpush1.bf16.msra.mxu0 0
    %835 = vmatprep.subr.bf16.mxu0 0
    %836 = vmatpush1.bf16.msra.mxu0 0
    %837 = vmatprep.subr.bf16.mxu0 0
    %838 = vmatpush1.bf16.msra.mxu0 0
    %839 = vmatprep.subr.bf16.mxu0 0
    %840 = vmatpush1.bf16.msra.mxu0 0
    %841 = vmatprep.mubr.bf16.mxu0 %v807
    %842 = vmatmul.mubr.bf16.gmra.mrb[0].mxu0 %v804
    %v843 = vpop.f32.mrb[0].mxu0
    %v844 = vadd.f32 %v86, %v843
    %v845 = vpop.f32.mrb[0].mxu0
    %v846 = vpop.f32.mrb[0].mxu0
    %v847 = vadd.f32 %v86, %v846
    %v848 = vpop.f32.mrb[0].mxu0
    %849 = vdwg.mxu0
    %v850 = vmax.f32 %v844, 0.0
    %v851 = vmax.f32 %v847, 0.0
    %v852 = vpack.c.bf16 %v851, %v850
    %v853 = vld [vmem:[#allocation2] sm:$0xff]
    %v854 = vld [vmem:[#allocation2 + $0x8] sm:$0xff]
    %v855 = vld [vmem:[#allocation2 + $0x10] sm:$0xff]
    %v856 = vld [vmem:[#allocation2 + $0x18] sm:$0xff]
    %v857 = vld [vmem:[#allocation2 + $0x20] sm:$0xff]
    %v858 = vld [vmem:[#allocation2 + $0x28] sm:$0xff]
    %v859 = vld [vmem:[#allocation2 + $0x30] sm:$0xff]
    %v860 = vld [vmem:[#allocation2 + $0x38] sm:$0xff]
    %v861 = vld [vmem:[#allocation2 + $0x40] sm:$0xff]
    %v862 = vld [vmem:[#allocation2 + $0x48] sm:$0xff]
    %v863 = vld [vmem:[#allocation2 + $0x50] sm:$0xff]
    %v864 = vld [vmem:[#allocation2 + $0x58] sm:$0xff]
    %v865 = vld [vmem:[#allocation2 + $0x60] sm:$0xff]
    %v866 = vld [vmem:[#allocation2 + $0x68] sm:$0xff]
    %v867 = vld [vmem:[#allocation2 + $0x70] sm:$0xff]
    %v868 = vld [vmem:[#allocation2 + $0x78] sm:$0xff]
    %v869 = vld [vmem:[#allocation2 + $0x80] sm:$0xff]
    %v870 = vld [vmem:[#allocation2 + $0x88] sm:$0xff]
    %v871 = vld [vmem:[#allocation2 + $0x90] sm:$0xff]
    %v872 = vld [vmem:[#allocation2 + $0x98] sm:$0xff]
    %v873 = vld [vmem:[#allocation2 + $0xa0] sm:$0xff]
    %v874 = vld [vmem:[#allocation2 + $0xa8] sm:$0xff]
    %v875 = vld [vmem:[#allocation2 + $0xb0] sm:$0xff]
    %v876 = vld [vmem:[#allocation2 + $0xb8] sm:$0xff]
    %v877 = vld [vmem:[#allocation2 + $0xc0] sm:$0xff]
    %v878 = vld [vmem:[#allocation2 + $0xc8] sm:$0xff]
    %v879 = vld [vmem:[#allocation2 + $0xd0] sm:$0xff]
    %v880 = vld [vmem:[#allocation2 + $0xd8] sm:$0xff]
    %v881 = vld [vmem:[#allocation2 + $0xe0] sm:$0xff]
    %v882 = vld [vmem:[#allocation2 + $0xe8] sm:$0xff]
    %v883 = vld [vmem:[#allocation2 + $0xf0] sm:$0xff]
    %v884 = vld [vmem:[#allocation2 + $0xf8] sm:$0xff]
    %v885 = vld [vmem:[#allocation2 + $0x100] sm:$0xff]
    %v886 = vld [vmem:[#allocation2 + $0x108] sm:$0xff]
    %v887 = vld [vmem:[#allocation2 + $0x110] sm:$0xff]
    %v888 = vld [vmem:[#allocation2 + $0x118] sm:$0xff]
    %v889 = vld [vmem:[#allocation2 + $0x120] sm:$0xff]
    %v890 = vld [vmem:[#allocation2 + $0x128] sm:$0xff]
    %v891 = vld [vmem:[#allocation2 + $0x130] sm:$0xff]
    %v892 = vld [vmem:[#allocation2 + $0x138] sm:$0xff]
    %v893 = vld [vmem:[#allocation2 + $0x140] sm:$0xff]
    %v894 = vld [vmem:[#allocation2 + $0x148] sm:$0xff]
    %v895 = vld [vmem:[#allocation2 + $0x150] sm:$0xff]
    %v896 = vld [vmem:[#allocation2 + $0x158] sm:$0xff]
    %v897 = vld [vmem:[#allocation2 + $0x160] sm:$0xff]
    %v898 = vld [vmem:[#allocation2 + $0x168] sm:$0xff]
    %v899 = vld [vmem:[#allocation2 + $0x170] sm:$0xff]
    %v900 = vld [vmem:[#allocation2 + $0x178] sm:$0xff]
    %v901 = vld [vmem:[#allocation2 + $0x180] sm:$0xff]
    %v902 = vld [vmem:[#allocation2 + $0x188] sm:$0xff]
    %v903 = vld [vmem:[#allocation2 + $0x190] sm:$0xff]
    %v904 = vld [vmem:[#allocation2 + $0x198] sm:$0xff]
    %v905 = vld [vmem:[#allocation2 + $0x1a0] sm:$0xff]
    %v906 = vld [vmem:[#allocation2 + $0x1a8] sm:$0xff]
    %v907 = vld [vmem:[#allocation2 + $0x1b0] sm:$0xff]
    %v908 = vld [vmem:[#allocation2 + $0x1b8] sm:$0xff]
    %v909 = vld [vmem:[#allocation2 + $0x1c0] sm:$0xff]
    %v910 = vld [vmem:[#allocation2 + $0x1c8] sm:$0xff]
    %v911 = vld [vmem:[#allocation2 + $0x1d0] sm:$0xff]
    %v912 = vld [vmem:[#allocation2 + $0x1d8] sm:$0xff]
    %v913 = vld [vmem:[#allocation2 + $0x1e0] sm:$0xff]
    %v914 = vld [vmem:[#allocation2 + $0x1e8] sm:$0xff]
    %v915 = vld [vmem:[#allocation2 + $0x1f0] sm:$0xff]
    %v916 = vld [vmem:[#allocation2 + $0x1f8] sm:$0xff]
    %v917 = vld [vmem:[#allocation2 + $0x200] sm:$0xff]
    %v918 = vld [vmem:[#allocation2 + $0x208] sm:$0xff]
    %v919 = vld [vmem:[#allocation2 + $0x210] sm:$0xff]
    %v920 = vld [vmem:[#allocation2 + $0x218] sm:$0xff]
    %v921 = vld [vmem:[#allocation2 + $0x220] sm:$0xff]
    %v922 = vld [vmem:[#allocation2 + $0x228] sm:$0xff]
    %v923 = vld [vmem:[#allocation2 + $0x230] sm:$0xff]
    %v924 = vld [vmem:[#allocation2 + $0x238] sm:$0xff]
    %v925 = vld [vmem:[#allocation2 + $0x240] sm:$0xff]
    %v926 = vld [vmem:[#allocation2 + $0x248] sm:$0xff]
    %v927 = vld [vmem:[#allocation2 + $0x250] sm:$0xff]
    %v928 = vld [vmem:[#allocation2 + $0x258] sm:$0xff]
    %v929 = vld [vmem:[#allocation2 + $0x260] sm:$0xff]
    %v930 = vld [vmem:[#allocation2 + $0x268] sm:$0xff]
    %v931 = vld [vmem:[#allocation2 + $0x270] sm:$0xff]
    %v932 = vld [vmem:[#allocation2 + $0x278] sm:$0xff]
    %v933 = vld [vmem:[#allocation2 + $0x280] sm:$0xff]
    %v934 = vld [vmem:[#allocation2 + $0x288] sm:$0xff]
    %v935 = vld [vmem:[#allocation2 + $0x290] sm:$0xff]
    %v936 = vld [vmem:[#allocation2 + $0x298] sm:$0xff]
    %v937 = vld [vmem:[#allocation2 + $0x2a0] sm:$0xff]
    %v938 = vld [vmem:[#allocation2 + $0x2a8] sm:$0xff]
    %v939 = vld [vmem:[#allocation2 + $0x2b0] sm:$0xff]
    %v940 = vld [vmem:[#allocation2 + $0x2b8] sm:$0xff]
    %v941 = vld [vmem:[#allocation2 + $0x2c0] sm:$0xff]
    %v942 = vld [vmem:[#allocation2 + $0x2c8] sm:$0xff]
    %v943 = vld [vmem:[#allocation2 + $0x2d0] sm:$0xff]
    %v944 = vld [vmem:[#allocation2 + $0x2d8] sm:$0xff]
    %v945 = vld [vmem:[#allocation2 + $0x2e0] sm:$0xff]
    %v946 = vld [vmem:[#allocation2 + $0x2e8] sm:$0xff]
    %v947 = vld [vmem:[#allocation2 + $0x2f0] sm:$0xff]
    %v948 = vld [vmem:[#allocation2 + $0x2f8] sm:$0xff]
    %v949 = vld [vmem:[#allocation2 + $0x300] sm:$0xff]
    %v950 = vld [vmem:[#allocation2 + $0x308] sm:$0xff]
    %v951 = vld [vmem:[#allocation2 + $0x310] sm:$0xff]
    %v952 = vld [vmem:[#allocation2 + $0x318] sm:$0xff]
    %v953 = vld [vmem:[#allocation2 + $0x320] sm:$0xff]
    %v954 = vld [vmem:[#allocation2 + $0x328] sm:$0xff]
    %v955 = vld [vmem:[#allocation2 + $0x330] sm:$0xff]
    %v956 = vld [vmem:[#allocation2 + $0x338] sm:$0xff]
    %v957 = vld [vmem:[#allocation2 + $0x340] sm:$0xff]
    %v958 = vld [vmem:[#allocation2 + $0x348] sm:$0xff]
    %v959 = vld [vmem:[#allocation2 + $0x350] sm:$0xff]
    %v960 = vld [vmem:[#allocation2 + $0x358] sm:$0xff]
    %v961 = vld [vmem:[#allocation2 + $0x360] sm:$0xff]
    %v962 = vld [vmem:[#allocation2 + $0x368] sm:$0xff]
    %v963 = vld [vmem:[#allocation2 + $0x370] sm:$0xff]
    %v964 = vld [vmem:[#allocation2 + $0x378] sm:$0xff]
    %v965 = vld [vmem:[#allocation2 + $0x380] sm:$0xff]
    %v966 = vld [vmem:[#allocation2 + $0x388] sm:$0xff]
    %v967 = vld [vmem:[#allocation2 + $0x390] sm:$0xff]
    %v968 = vld [vmem:[#allocation2 + $0x398] sm:$0xff]
    %v969 = vld [vmem:[#allocation2 + $0x3a0] sm:$0xff]
    %v970 = vld [vmem:[#allocation2 + $0x3a8] sm:$0xff]
    %v971 = vld [vmem:[#allocation2 + $0x3b0] sm:$0xff]
    %v972 = vld [vmem:[#allocation2 + $0x3b8] sm:$0xff]
    %v973 = vld [vmem:[#allocation2 + $0x3c0] sm:$0xff]
    %v974 = vld [vmem:[#allocation2 + $0x3c8] sm:$0xff]
    %v975 = vld [vmem:[#allocation2 + $0x3d0] sm:$0xff]
    %v976 = vld [vmem:[#allocation2 + $0x3d8] sm:$0xff]
    %v977 = vld [vmem:[#allocation2 + $0x3e0] sm:$0xff]
    %v978 = vld [vmem:[#allocation2 + $0x3e8] sm:$0xff]
    %v979 = vld [vmem:[#allocation2 + $0x3f0] sm:$0xff]
    %v980 = vld [vmem:[#allocation2 + $0x3f8] sm:$0xff]
    %v981 = vld [vmem:[#allocation2 + $0x400] sm:$0xff]
    %v982 = vld [vmem:[#allocation2 + $0x408] sm:$0xff]
    %v983 = vld [vmem:[#allocation2 + $0x410] sm:$0xff]
    %v984 = vld [vmem:[#allocation2 + $0x418] sm:$0xff]
    %v985 = vld [vmem:[#allocation2 + $0x420] sm:$0xff]
    %v986 = vld [vmem:[#allocation2 + $0x428] sm:$0xff]
    %v987 = vld [vmem:[#allocation2 + $0x430] sm:$0xff]
    %v988 = vld [vmem:[#allocation2 + $0x438] sm:$0xff]
    %v989 = vld [vmem:[#allocation2 + $0x440] sm:$0xff]
    %v990 = vld [vmem:[#allocation2 + $0x448] sm:$0xff]
    %v991 = vld [vmem:[#allocation2 + $0x450] sm:$0xff]
    %v992 = vld [vmem:[#allocation2 + $0x458] sm:$0xff]
    %v993 = vld [vmem:[#allocation2 + $0x460] sm:$0xff]
    %v994 = vld [vmem:[#allocation2 + $0x468] sm:$0xff]
    %v995 = vld [vmem:[#allocation2 + $0x470] sm:$0xff]
    %v996 = vld [vmem:[#allocation2 + $0x478] sm:$0xff]
    %v997 = vld [vmem:[#allocation2 + $0x480] sm:$0xff]
    %v998 = vld [vmem:[#allocation2 + $0x488] sm:$0xff]
    %v999 = vld [vmem:[#allocation2 + $0x490] sm:$0xff]
    %v1000 = vld [vmem:[#allocation2 + $0x498] sm:$0xff]
    %v1001 = vld [vmem:[#allocation2 + $0x4a0] sm:$0xff]
    %v1002 = vld [vmem:[#allocation2 + $0x4a8] sm:$0xff]
    %v1003 = vld [vmem:[#allocation2 + $0x4b0] sm:$0xff]
    %v1004 = vld [vmem:[#allocation2 + $0x4b8] sm:$0xff]
    %v1005 = vld [vmem:[#allocation2 + $0x4c0] sm:$0xff]
    %v1006 = vld [vmem:[#allocation2 + $0x4c8] sm:$0xff]
    %v1007 = vld [vmem:[#allocation2 + $0x4d0] sm:$0xff]
    %v1008 = vld [vmem:[#allocation2 + $0x4d8] sm:$0xff]
    %v1009 = vld [vmem:[#allocation2 + $0x4e0] sm:$0xff]
    %v1010 = vld [vmem:[#allocation2 + $0x4e8] sm:$0xff]
    %v1011 = vld [vmem:[#allocation2 + $0x4f0] sm:$0xff]
    %v1012 = vld [vmem:[#allocation2 + $0x4f8] sm:$0xff]
    %v1013 = vld [vmem:[#allocation2 + $0x500] sm:$0xff]
    %v1014 = vld [vmem:[#allocation2 + $0x508] sm:$0xff]
    %v1015 = vld [vmem:[#allocation2 + $0x510] sm:$0xff]
    %v1016 = vld [vmem:[#allocation2 + $0x518] sm:$0xff]
    %v1017 = vld [vmem:[#allocation2 + $0x520] sm:$0xff]
    %v1018 = vld [vmem:[#allocation2 + $0x528] sm:$0xff]
    %v1019 = vld [vmem:[#allocation2 + $0x530] sm:$0xff]
    %v1020 = vld [vmem:[#allocation2 + $0x538] sm:$0xff]
    %v1021 = vld [vmem:[#allocation2 + $0x540] sm:$0xff]
    %v1022 = vld [vmem:[#allocation2 + $0x548] sm:$0xff]
    %v1023 = vld [vmem:[#allocation2 + $0x550] sm:$0xff]
    %v1024 = vld [vmem:[#allocation2 + $0x558] sm:$0xff]
    %v1025 = vld [vmem:[#allocation2 + $0x560] sm:$0xff]
    %v1026 = vld [vmem:[#allocation2 + $0x568] sm:$0xff]
    %v1027 = vld [vmem:[#allocation2 + $0x570] sm:$0xff]
    %v1028 = vld [vmem:[#allocation2 + $0x578] sm:$0xff]
    %v1029 = vld [vmem:[#allocation2 + $0x580] sm:$0xff]
    %v1030 = vld [vmem:[#allocation2 + $0x588] sm:$0xff]
    %v1031 = vld [vmem:[#allocation2 + $0x590] sm:$0xff]
    %v1032 = vld [vmem:[#allocation2 + $0x598] sm:$0xff]
    %v1033 = vld [vmem:[#allocation2 + $0x5a0] sm:$0xff]
    %v1034 = vld [vmem:[#allocation2 + $0x5a8] sm:$0xff]
    %v1035 = vld [vmem:[#allocation2 + $0x5b0] sm:$0xff]
    %v1036 = vld [vmem:[#allocation2 + $0x5b8] sm:$0xff]
    %v1037 = vld [vmem:[#allocation2 + $0x5c0] sm:$0xff]
    %v1038 = vld [vmem:[#allocation2 + $0x5c8] sm:$0xff]
    %v1039 = vld [vmem:[#allocation2 + $0x5d0] sm:$0xff]
    %v1040 = vld [vmem:[#allocation2 + $0x5d8] sm:$0xff]
    %v1041 = vld [vmem:[#allocation2 + $0x5e0] sm:$0xff]
    %v1042 = vld [vmem:[#allocation2 + $0x5e8] sm:$0xff]
    %v1043 = vld [vmem:[#allocation2 + $0x5f0] sm:$0xff]
    %v1044 = vld [vmem:[#allocation2 + $0x5f8] sm:$0xff]
    %v1045 = vld [vmem:[%s4] sm:$0x3]
    %v1047 = vlaneseq
    %v1048 = vshrl.u32 %v1047, 7
    %v1049 = vsub.s32 0, %v1048
    %v1050 = vrot.slane %v1045, %v1049
    %v1051 = vlaneseq
    %v1052 = vshrl.u32 %v1051, 7
    %v1053 = vsub.s32 1, %v1052
    %v1054 = vrot.slane %v1045, %v1053
    %v1249 = vunpack.c.l.b16 %v853
    %v1250 = vunpack.c.h.b16 %v853
    %v1251 = vunpack.c.l.b16 %v854
    %v1252 = vunpack.c.h.b16 %v854
    %v1253 = vunpack.c.l.b16 %v855
    %v1254 = vunpack.c.h.b16 %v855
    %v1255 = vunpack.c.l.b16 %v856
    %v1256 = vunpack.c.h.b16 %v856
    %v1257 = vunpack.c.l.b16 %v857
    %v1258 = vunpack.c.h.b16 %v857
    %v1259 = vunpack.c.l.b16 %v858
    %v1260 = vunpack.c.h.b16 %v858
    %v1261 = vunpack.c.l.b16 %v859
    %v1262 = vunpack.c.h.b16 %v859
    %v1263 = vunpack.c.l.b16 %v860
    %v1264 = vunpack.c.h.b16 %v860
    %v1265 = vunpack.c.l.b16 %v861
    %v1266 = vunpack.c.h.b16 %v861
    %v1267 = vunpack.c.l.b16 %v862
    %v1268 = vunpack.c.h.b16 %v862
    %v1269 = vunpack.c.l.b16 %v863
    %v1270 = vunpack.c.h.b16 %v863
    %v1271 = vunpack.c.l.b16 %v864
    %v1272 = vunpack.c.h.b16 %v864
    %v1273 = vunpack.c.l.b16 %v865
    %v1274 = vunpack.c.h.b16 %v865
    %v1275 = vunpack.c.l.b16 %v866
    %v1276 = vunpack.c.h.b16 %v866
    %v1277 = vunpack.c.l.b16 %v867
    %v1278 = vunpack.c.h.b16 %v867
    %v1279 = vunpack.c.l.b16 %v868
    %v1280 = vunpack.c.h.b16 %v868
    %v1281 = vunpack.c.l.b16 %v869
    %v1282 = vunpack.c.h.b16 %v869
    %v1283 = vunpack.c.l.b16 %v870
    %v1284 = vunpack.c.h.b16 %v870
    %v1285 = vunpack.c.l.b16 %v871
    %v1286 = vunpack.c.h.b16 %v871
    %v1287 = vunpack.c.l.b16 %v872
    %v1288 = vunpack.c.h.b16 %v872
    %v1289 = vunpack.c.l.b16 %v873
    %v1290 = vunpack.c.h.b16 %v873
    %v1291 = vunpack.c.l.b16 %v874
    %v1292 = vunpack.c.h.b16 %v874
    %v1293 = vunpack.c.l.b16 %v875
    %v1294 = vunpack.c.h.b16 %v875
    %v1295 = vunpack.c.l.b16 %v876
    %v1296 = vunpack.c.h.b16 %v876
    %v1297 = vunpack.c.l.b16 %v877
    %v1298 = vunpack.c.h.b16 %v877
    %v1299 = vunpack.c.l.b16 %v878
    %v1300 = vunpack.c.h.b16 %v878
    %v1301 = vunpack.c.l.b16 %v879
    %v1302 = vunpack.c.h.b16 %v879
    %v1303 = vunpack.c.l.b16 %v880
    %v1304 = vunpack.c.h.b16 %v880
    %v1305 = vunpack.c.l.b16 %v881
    %v1306 = vunpack.c.h.b16 %v881
    %v1307 = vunpack.c.l.b16 %v882
    %v1308 = vunpack.c.h.b16 %v882
    %v1309 = vunpack.c.l.b16 %v883
    %v1310 = vunpack.c.h.b16 %v883
    %v1311 = vunpack.c.l.b16 %v884
    %v1312 = vunpack.c.h.b16 %v884
    %v1313 = vunpack.c.l.b16 %v885
    %v1314 = vunpack.c.h.b16 %v885
    %v1315 = vunpack.c.l.b16 %v886
    %v1316 = vunpack.c.h.b16 %v886
    %v1317 = vunpack.c.l.b16 %v887
    %v1318 = vunpack.c.h.b16 %v887
    %v1319 = vunpack.c.l.b16 %v888
    %v1320 = vunpack.c.h.b16 %v888
    %v1321 = vunpack.c.l.b16 %v889
    %v1322 = vunpack.c.h.b16 %v889
    %v1323 = vunpack.c.l.b16 %v890
    %v1324 = vunpack.c.h.b16 %v890
    %v1325 = vunpack.c.l.b16 %v891
    %v1326 = vunpack.c.h.b16 %v891
    %v1327 = vunpack.c.l.b16 %v892
    %v1328 = vunpack.c.h.b16 %v892
    %v1329 = vunpack.c.l.b16 %v893
    %v1330 = vunpack.c.h.b16 %v893
    %v1331 = vunpack.c.l.b16 %v894
    %v1332 = vunpack.c.h.b16 %v894
    %v1333 = vunpack.c.l.b16 %v895
    %v1334 = vunpack.c.h.b16 %v895
    %v1335 = vunpack.c.l.b16 %v896
    %v1336 = vunpack.c.h.b16 %v896
    %v1337 = vunpack.c.l.b16 %v897
    %v1338 = vunpack.c.h.b16 %v897
    %v1339 = vunpack.c.l.b16 %v898
    %v1340 = vunpack.c.h.b16 %v898
    %v1341 = vunpack.c.l.b16 %v899
    %v1342 = vunpack.c.h.b16 %v899
    %v1343 = vunpack.c.l.b16 %v900
    %v1344 = vunpack.c.h.b16 %v900
    %v1345 = vunpack.c.l.b16 %v901
    %v1346 = vunpack.c.h.b16 %v901
    %v1347 = vunpack.c.l.b16 %v902
    %v1348 = vunpack.c.h.b16 %v902
    %v1349 = vunpack.c.l.b16 %v903
    %v1350 = vunpack.c.h.b16 %v903
    %v1351 = vunpack.c.l.b16 %v904
    %v1352 = vunpack.c.h.b16 %v904
    %v1353 = vunpack.c.l.b16 %v905
    %v1354 = vunpack.c.h.b16 %v905
    %v1355 = vunpack.c.l.b16 %v906
    %v1356 = vunpack.c.h.b16 %v906
    %v1357 = vunpack.c.l.b16 %v907
    %v1358 = vunpack.c.h.b16 %v907
    %v1359 = vunpack.c.l.b16 %v908
    %v1360 = vunpack.c.h.b16 %v908
    %v1361 = vunpack.c.l.b16 %v909
    %v1362 = vunpack.c.h.b16 %v909
    %v1363 = vunpack.c.l.b16 %v910
    %v1364 = vunpack.c.h.b16 %v910
    %v1365 = vunpack.c.l.b16 %v911
    %v1366 = vunpack.c.h.b16 %v911
    %v1367 = vunpack.c.l.b16 %v912
    %v1368 = vunpack.c.h.b16 %v912
    %v1369 = vunpack.c.l.b16 %v913
    %v1370 = vunpack.c.h.b16 %v913
    %v1371 = vunpack.c.l.b16 %v914
    %v1372 = vunpack.c.h.b16 %v914
    %v1373 = vunpack.c.l.b16 %v915
    %v1374 = vunpack.c.h.b16 %v915
    %v1375 = vunpack.c.l.b16 %v916
    %v1376 = vunpack.c.h.b16 %v916
    %v1377 = vunpack.c.l.b16 %v917
    %v1378 = vunpack.c.h.b16 %v917
    %v1379 = vunpack.c.l.b16 %v918
    %v1380 = vunpack.c.h.b16 %v918
    %v1381 = vunpack.c.l.b16 %v919
    %v1382 = vunpack.c.h.b16 %v919
    %v1383 = vunpack.c.l.b16 %v920
    %v1384 = vunpack.c.h.b16 %v920
    %v1385 = vunpack.c.l.b16 %v921
    %v1386 = vunpack.c.h.b16 %v921
    %v1387 = vunpack.c.l.b16 %v922
    %v1388 = vunpack.c.h.b16 %v922
    %v1389 = vunpack.c.l.b16 %v923
    %v1390 = vunpack.c.h.b16 %v923
    %v1391 = vunpack.c.l.b16 %v924
    %v1392 = vunpack.c.h.b16 %v924
    %v1393 = vunpack.c.l.b16 %v925
    %v1394 = vunpack.c.h.b16 %v925
    %v1395 = vunpack.c.l.b16 %v926
    %v1396 = vunpack.c.h.b16 %v926
    %v1397 = vunpack.c.l.b16 %v927
    %v1398 = vunpack.c.h.b16 %v927
    %v1399 = vunpack.c.l.b16 %v928
    %v1400 = vunpack.c.h.b16 %v928
    %v1401 = vunpack.c.l.b16 %v929
    %v1402 = vunpack.c.h.b16 %v929
    %v1403 = vunpack.c.l.b16 %v930
    %v1404 = vunpack.c.h.b16 %v930
    %v1405 = vunpack.c.l.b16 %v931
    %v1406 = vunpack.c.h.b16 %v931
    %v1407 = vunpack.c.l.b16 %v932
    %v1408 = vunpack.c.h.b16 %v932
    %v1409 = vunpack.c.l.b16 %v933
    %v1410 = vunpack.c.h.b16 %v933
    %v1411 = vunpack.c.l.b16 %v934
    %v1412 = vunpack.c.h.b16 %v934
    %v1413 = vunpack.c.l.b16 %v935
    %v1414 = vunpack.c.h.b16 %v935
    %v1415 = vunpack.c.l.b16 %v936
    %v1416 = vunpack.c.h.b16 %v936
    %v1417 = vunpack.c.l.b16 %v937
    %v1418 = vunpack.c.h.b16 %v937
    %v1419 = vunpack.c.l.b16 %v938
    %v1420 = vunpack.c.h.b16 %v938
    %v1421 = vunpack.c.l.b16 %v939
    %v1422 = vunpack.c.h.b16 %v939
    %v1423 = vunpack.c.l.b16 %v940
    %v1424 = vunpack.c.h.b16 %v940
    %v1425 = vunpack.c.l.b16 %v941
    %v1426 = vunpack.c.h.b16 %v941
    %v1427 = vunpack.c.l.b16 %v942
    %v1428 = vunpack.c.h.b16 %v942
    %v1429 = vunpack.c.l.b16 %v943
    %v1430 = vunpack.c.h.b16 %v943
    %v1431 = vunpack.c.l.b16 %v944
    %v1432 = vunpack.c.h.b16 %v944
    %v1433 = vunpack.c.l.b16 %v945
    %v1434 = vunpack.c.h.b16 %v945
    %v1435 = vunpack.c.l.b16 %v946
    %v1436 = vunpack.c.h.b16 %v946
    %v1437 = vunpack.c.l.b16 %v947
    %v1438 = vunpack.c.h.b16 %v947
    %v1439 = vunpack.c.l.b16 %v948
    %v1440 = vunpack.c.h.b16 %v948
    %v1441 = vunpack.c.l.b16 %v949
    %v1442 = vunpack.c.h.b16 %v949
    %v1443 = vunpack.c.l.b16 %v950
    %v1444 = vunpack.c.h.b16 %v950
    %v1445 = vunpack.c.l.b16 %v951
    %v1446 = vunpack.c.h.b16 %v951
    %v1447 = vunpack.c.l.b16 %v952
    %v1448 = vunpack.c.h.b16 %v952
    %v1449 = vunpack.c.l.b16 %v953
    %v1450 = vunpack.c.h.b16 %v953
    %v1451 = vunpack.c.l.b16 %v954
    %v1452 = vunpack.c.h.b16 %v954
    %v1453 = vunpack.c.l.b16 %v955
    %v1454 = vunpack.c.h.b16 %v955
    %v1455 = vunpack.c.l.b16 %v956
    %v1456 = vunpack.c.h.b16 %v956
    %v1457 = vunpack.c.l.b16 %v957
    %v1458 = vunpack.c.h.b16 %v957
    %v1459 = vunpack.c.l.b16 %v958
    %v1460 = vunpack.c.h.b16 %v958
    %v1461 = vunpack.c.l.b16 %v959
    %v1462 = vunpack.c.h.b16 %v959
    %v1463 = vunpack.c.l.b16 %v960
    %v1464 = vunpack.c.h.b16 %v960
    %v1465 = vunpack.c.l.b16 %v961
    %v1466 = vunpack.c.h.b16 %v961
    %v1467 = vunpack.c.l.b16 %v962
    %v1468 = vunpack.c.h.b16 %v962
    %v1469 = vunpack.c.l.b16 %v963
    %v1470 = vunpack.c.h.b16 %v963
    %v1471 = vunpack.c.l.b16 %v964
    %v1472 = vunpack.c.h.b16 %v964
    %v1473 = vunpack.c.l.b16 %v965
    %v1474 = vunpack.c.h.b16 %v965
    %v1475 = vunpack.c.l.b16 %v966
    %v1476 = vunpack.c.h.b16 %v966
    %v1477 = vunpack.c.l.b16 %v967
    %v1478 = vunpack.c.h.b16 %v967
    %v1479 = vunpack.c.l.b16 %v968
    %v1480 = vunpack.c.h.b16 %v968
    %v1481 = vunpack.c.l.b16 %v969
    %v1482 = vunpack.c.h.b16 %v969
    %v1483 = vunpack.c.l.b16 %v970
    %v1484 = vunpack.c.h.b16 %v970
    %v1485 = vunpack.c.l.b16 %v971
    %v1486 = vunpack.c.h.b16 %v971
    %v1487 = vunpack.c.l.b16 %v972
    %v1488 = vunpack.c.h.b16 %v972
    %v1489 = vunpack.c.l.b16 %v973
    %v1490 = vunpack.c.h.b16 %v973
    %v1491 = vunpack.c.l.b16 %v974
    %v1492 = vunpack.c.h.b16 %v974
    %v1493 = vunpack.c.l.b16 %v975
    %v1494 = vunpack.c.h.b16 %v975
    %v1495 = vunpack.c.l.b16 %v976
    %v1496 = vunpack.c.h.b16 %v976
    %v1497 = vunpack.c.l.b16 %v977
    %v1498 = vunpack.c.h.b16 %v977
    %v1499 = vunpack.c.l.b16 %v978
    %v1500 = vunpack.c.h.b16 %v978
    %v1501 = vunpack.c.l.b16 %v979
    %v1502 = vunpack.c.h.b16 %v979
    %v1503 = vunpack.c.l.b16 %v980
    %v1504 = vunpack.c.h.b16 %v980
    %v1505 = vunpack.c.l.b16 %v981
    %v1506 = vunpack.c.h.b16 %v981
    %v1507 = vunpack.c.l.b16 %v982
    %v1508 = vunpack.c.h.b16 %v982
    %v1509 = vunpack.c.l.b16 %v983
    %v1510 = vunpack.c.h.b16 %v983
    %v1511 = vunpack.c.l.b16 %v984
    %v1512 = vunpack.c.h.b16 %v984
    %v1513 = vunpack.c.l.b16 %v985
    %v1514 = vunpack.c.h.b16 %v985
    %v1515 = vunpack.c.l.b16 %v986
    %v1516 = vunpack.c.h.b16 %v986
    %v1517 = vunpack.c.l.b16 %v987
    %v1518 = vunpack.c.h.b16 %v987
    %v1519 = vunpack.c.l.b16 %v988
    %v1520 = vunpack.c.h.b16 %v988
    %v1521 = vunpack.c.l.b16 %v989
    %v1522 = vunpack.c.h.b16 %v989
    %v1523 = vunpack.c.l.b16 %v990
    %v1524 = vunpack.c.h.b16 %v990
    %v1525 = vunpack.c.l.b16 %v991
    %v1526 = vunpack.c.h.b16 %v991
    %v1527 = vunpack.c.l.b16 %v992
    %v1528 = vunpack.c.h.b16 %v992
    %v1529 = vunpack.c.l.b16 %v993
    %v1530 = vunpack.c.h.b16 %v993
    %v1531 = vunpack.c.l.b16 %v994
    %v1532 = vunpack.c.h.b16 %v994
    %v1533 = vunpack.c.l.b16 %v995
    %v1534 = vunpack.c.h.b16 %v995
    %v1535 = vunpack.c.l.b16 %v996
    %v1536 = vunpack.c.h.b16 %v996
    %v1537 = vunpack.c.l.b16 %v997
    %v1538 = vunpack.c.h.b16 %v997
    %v1539 = vunpack.c.l.b16 %v998
    %v1540 = vunpack.c.h.b16 %v998
    %v1541 = vunpack.c.l.b16 %v999
    %v1542 = vunpack.c.h.b16 %v999
    %v1543 = vunpack.c.l.b16 %v1000
    %v1544 = vunpack.c.h.b16 %v1000
    %v1545 = vunpack.c.l.b16 %v1001
    %v1546 = vunpack.c.h.b16 %v1001
    %v1547 = vunpack.c.l.b16 %v1002
    %v1548 = vunpack.c.h.b16 %v1002
    %v1549 = vunpack.c.l.b16 %v1003
    %v1550 = vunpack.c.h.b16 %v1003
    %v1551 = vunpack.c.l.b16 %v1004
    %v1552 = vunpack.c.h.b16 %v1004
    %v1553 = vunpack.c.l.b16 %v1005
    %v1554 = vunpack.c.h.b16 %v1005
    %v1555 = vunpack.c.l.b16 %v1006
    %v1556 = vunpack.c.h.b16 %v1006
    %v1557 = vunpack.c.l.b16 %v1007
    %v1558 = vunpack.c.h.b16 %v1007
    %v1559 = vunpack.c.l.b16 %v1008
    %v1560 = vunpack.c.h.b16 %v1008
    %v1561 = vunpack.c.l.b16 %v1009
    %v1562 = vunpack.c.h.b16 %v1009
    %v1563 = vunpack.c.l.b16 %v1010
    %v1564 = vunpack.c.h.b16 %v1010
    %v1565 = vunpack.c.l.b16 %v1011
    %v1566 = vunpack.c.h.b16 %v1011
    %v1567 = vunpack.c.l.b16 %v1012
    %v1568 = vunpack.c.h.b16 %v1012
    %v1569 = vunpack.c.l.b16 %v1013
    %v1570 = vunpack.c.h.b16 %v1013
    %v1571 = vunpack.c.l.b16 %v1014
    %v1572 = vunpack.c.h.b16 %v1014
    %v1573 = vunpack.c.l.b16 %v1015
    %v1574 = vunpack.c.h.b16 %v1015
    %v1575 = vunpack.c.l.b16 %v1016
    %v1576 = vunpack.c.h.b16 %v1016
    %v1577 = vunpack.c.l.b16 %v1017
    %v1578 = vunpack.c.h.b16 %v1017
    %v1579 = vunpack.c.l.b16 %v1018
    %v1580 = vunpack.c.h.b16 %v1018
    %v1581 = vunpack.c.l.b16 %v1019
    %v1582 = vunpack.c.h.b16 %v1019
    %v1583 = vunpack.c.l.b16 %v1020
    %v1584 = vunpack.c.h.b16 %v1020
    %v1585 = vunpack.c.l.b16 %v1021
    %v1586 = vunpack.c.h.b16 %v1021
    %v1587 = vunpack.c.l.b16 %v1022
    %v1588 = vunpack.c.h.b16 %v1022
    %v1589 = vunpack.c.l.b16 %v1023
    %v1590 = vunpack.c.h.b16 %v1023
    %v1591 = vunpack.c.l.b16 %v1024
    %v1592 = vunpack.c.h.b16 %v1024
    %v1593 = vunpack.c.l.b16 %v1025
    %v1594 = vunpack.c.h.b16 %v1025
    %v1595 = vunpack.c.l.b16 %v1026
    %v1596 = vunpack.c.h.b16 %v1026
    %v1597 = vunpack.c.l.b16 %v1027
    %v1598 = vunpack.c.h.b16 %v1027
    %v1599 = vunpack.c.l.b16 %v1028
    %v1600 = vunpack.c.h.b16 %v1028
    %v1601 = vunpack.c.l.b16 %v1029
    %v1602 = vunpack.c.h.b16 %v1029
    %v1603 = vunpack.c.l.b16 %v1030
    %v1604 = vunpack.c.h.b16 %v1030
    %v1605 = vunpack.c.l.b16 %v1031
    %v1606 = vunpack.c.h.b16 %v1031
    %v1607 = vunpack.c.l.b16 %v1032
    %v1608 = vunpack.c.h.b16 %v1032
    %v1609 = vunpack.c.l.b16 %v1033
    %v1610 = vunpack.c.h.b16 %v1033
    %v1611 = vunpack.c.l.b16 %v1034
    %v1612 = vunpack.c.h.b16 %v1034
    %v1613 = vunpack.c.l.b16 %v1035
    %v1614 = vunpack.c.h.b16 %v1035
    %v1615 = vunpack.c.l.b16 %v1036
    %v1616 = vunpack.c.h.b16 %v1036
    %v1617 = vunpack.c.l.b16 %v1037
    %v1618 = vunpack.c.h.b16 %v1037
    %v1619 = vunpack.c.l.b16 %v1038
    %v1620 = vunpack.c.h.b16 %v1038
    %v1621 = vunpack.c.l.b16 %v1039
    %v1622 = vunpack.c.h.b16 %v1039
    %v1623 = vunpack.c.l.b16 %v1040
    %v1624 = vunpack.c.h.b16 %v1040
    %v1625 = vunpack.c.l.b16 %v1041
    %v1626 = vunpack.c.h.b16 %v1041
    %v1627 = vunpack.c.l.b16 %v1042
    %v1628 = vunpack.c.h.b16 %v1042
    %v1629 = vunpack.c.l.b16 %v1043
    %v1630 = vunpack.c.h.b16 %v1043
    %v1631 = vunpack.c.l.b16 %v1044
    %v1632 = vunpack.c.h.b16 %v1044
    %v1633 = vpack.c.b16 %v1251, %v1249
    %v1634 = vpack.c.b16 %v1252, %v1250
    %v1635 = vpack.c.b16 %v1255, %v1253
    %v1636 = vpack.c.b16 %v1256, %v1254
    %v1637 = vpack.c.b16 %v1259, %v1257
    %v1638 = vpack.c.b16 %v1260, %v1258
    %v1639 = vpack.c.b16 %v1263, %v1261
    %v1640 = vpack.c.b16 %v1264, %v1262
    %v1641 = vpack.c.b16 %v1267, %v1265
    %v1642 = vpack.c.b16 %v1268, %v1266
    %v1643 = vpack.c.b16 %v1271, %v1269
    %v1644 = vpack.c.b16 %v1272, %v1270
    %v1645 = vpack.c.b16 %v1275, %v1273
    %v1646 = vpack.c.b16 %v1276, %v1274
    %v1647 = vpack.c.b16 %v1279, %v1277
    %v1648 = vpack.c.b16 %v1280, %v1278
    %v1649 = vpack.c.b16 %v1283, %v1281
    %v1650 = vpack.c.b16 %v1284, %v1282
    %v1651 = vpack.c.b16 %v1287, %v1285
    %v1652 = vpack.c.b16 %v1288, %v1286
    %v1653 = vpack.c.b16 %v1291, %v1289
    %v1654 = vpack.c.b16 %v1292, %v1290
    %v1655 = vpack.c.b16 %v1295, %v1293
    %v1656 = vpack.c.b16 %v1296, %v1294
    %v1657 = vpack.c.b16 %v1299, %v1297
    %v1658 = vpack.c.b16 %v1300, %v1298
    %v1659 = vpack.c.b16 %v1303, %v1301
    %v1660 = vpack.c.b16 %v1304, %v1302
    %v1661 = vpack.c.b16 %v1307, %v1305
    %v1662 = vpack.c.b16 %v1308, %v1306
    %v1663 = vpack.c.b16 %v1311, %v1309
    %v1664 = vpack.c.b16 %v1312, %v1310
    %v1665 = vpack.c.b16 %v1315, %v1313
    %v1666 = vpack.c.b16 %v1316, %v1314
    %v1667 = vpack.c.b16 %v1319, %v1317
    %v1668 = vpack.c.b16 %v1320, %v1318
    %v1669 = vpack.c.b16 %v1323, %v1321
    %v1670 = vpack.c.b16 %v1324, %v1322
    %v1671 = vpack.c.b16 %v1327, %v1325
    %v1672 = vpack.c.b16 %v1328, %v1326
    %v1673 = vpack.c.b16 %v1331, %v1329
    %v1674 = vpack.c.b16 %v1332, %v1330
    %v1675 = vpack.c.b16 %v1335, %v1333
    %v1676 = vpack.c.b16 %v1336, %v1334
    %v1677 = vpack.c.b16 %v1339, %v1337
    %v1678 = vpack.c.b16 %v1340, %v1338
    %v1679 = vpack.c.b16 %v1343, %v1341
    %v1680 = vpack.c.b16 %v1344, %v1342
    %v1681 = vpack.c.b16 %v1347, %v1345
    %v1682 = vpack.c.b16 %v1348, %v1346
    %v1683 = vpack.c.b16 %v1351, %v1349
    %v1684 = vpack.c.b16 %v1352, %v1350
    %v1685 = vpack.c.b16 %v1355, %v1353
    %v1686 = vpack.c.b16 %v1356, %v1354
    %v1687 = vpack.c.b16 %v1359, %v1357
    %v1688 = vpack.c.b16 %v1360, %v1358
    %v1689 = vpack.c.b16 %v1363, %v1361
    %v1690 = vpack.c.b16 %v1364, %v1362
    %v1691 = vpack.c.b16 %v1367, %v1365
    %v1692 = vpack.c.b16 %v1368, %v1366
    %v1693 = vpack.c.b16 %v1371, %v1369
    %v1694 = vpack.c.b16 %v1372, %v1370
    %v1695 = vpack.c.b16 %v1375, %v1373
    %v1696 = vpack.c.b16 %v1376, %v1374
    %v1697 = vpack.c.b16 %v1379, %v1377
    %v1698 = vpack.c.b16 %v1380, %v1378
    %v1699 = vpack.c.b16 %v1383, %v1381
    %v1700 = vpack.c.b16 %v1384, %v1382
    %v1701 = vpack.c.b16 %v1387, %v1385
    %v1702 = vpack.c.b16 %v1388, %v1386
    %v1703 = vpack.c.b16 %v1391, %v1389
    %v1704 = vpack.c.b16 %v1392, %v1390
    %v1705 = vpack.c.b16 %v1395, %v1393
    %v1706 = vpack.c.b16 %v1396, %v1394
    %v1707 = vpack.c.b16 %v1399, %v1397
    %v1708 = vpack.c.b16 %v1400, %v1398
    %v1709 = vpack.c.b16 %v1403, %v1401
    %v1710 = vpack.c.b16 %v1404, %v1402
    %v1711 = vpack.c.b16 %v1407, %v1405
    %v1712 = vpack.c.b16 %v1408, %v1406
    %v1713 = vpack.c.b16 %v1411, %v1409
    %v1714 = vpack.c.b16 %v1412, %v1410
    %v1715 = vpack.c.b16 %v1415, %v1413
    %v1716 = vpack.c.b16 %v1416, %v1414
    %v1717 = vpack.c.b16 %v1419, %v1417
    %v1718 = vpack.c.b16 %v1420, %v1418
    %v1719 = vpack.c.b16 %v1423, %v1421
    %v1720 = vpack.c.b16 %v1424, %v1422
    %v1721 = vpack.c.b16 %v1427, %v1425
    %v1722 = vpack.c.b16 %v1428, %v1426
    %v1723 = vpack.c.b16 %v1431, %v1429
    %v1724 = vpack.c.b16 %v1432, %v1430
    %v1725 = vpack.c.b16 %v1435, %v1433
    %v1726 = vpack.c.b16 %v1436, %v1434
    %v1727 = vpack.c.b16 %v1439, %v1437
    %v1728 = vpack.c.b16 %v1440, %v1438
    %v1729 = vpack.c.b16 %v1443, %v1441
    %v1730 = vpack.c.b16 %v1444, %v1442
    %v1731 = vpack.c.b16 %v1447, %v1445
    %v1732 = vpack.c.b16 %v1448, %v1446
    %v1733 = vpack.c.b16 %v1451, %v1449
    %v1734 = vpack.c.b16 %v1452, %v1450
    %v1735 = vpack.c.b16 %v1455, %v1453
    %v1736 = vpack.c.b16 %v1456, %v1454
    %v1737 = vpack.c.b16 %v1459, %v1457
    %v1738 = vpack.c.b16 %v1460, %v1458
    %v1739 = vpack.c.b16 %v1463, %v1461
    %v1740 = vpack.c.b16 %v1464, %v1462
    %v1741 = vpack.c.b16 %v1467, %v1465
    %v1742 = vpack.c.b16 %v1468, %v1466
    %v1743 = vpack.c.b16 %v1471, %v1469
    %v1744 = vpack.c.b16 %v1472, %v1470
    %v1745 = vpack.c.b16 %v1475, %v1473
    %v1746 = vpack.c.b16 %v1476, %v1474
    %v1747 = vpack.c.b16 %v1479, %v1477
    %v1748 = vpack.c.b16 %v1480, %v1478
    %v1749 = vpack.c.b16 %v1483, %v1481
    %v1750 = vpack.c.b16 %v1484, %v1482
    %v1751 = vpack.c.b16 %v1487, %v1485
    %v1752 = vpack.c.b16 %v1488, %v1486
    %v1753 = vpack.c.b16 %v1491, %v1489
    %v1754 = vpack.c.b16 %v1492, %v1490
    %v1755 = vpack.c.b16 %v1495, %v1493
    %v1756 = vpack.c.b16 %v1496, %v1494
    %v1757 = vpack.c.b16 %v1499, %v1497
    %v1758 = vpack.c.b16 %v1500, %v1498
    %v1759 = vpack.c.b16 %v1503, %v1501
    %v1760 = vpack.c.b16 %v1504, %v1502
    %v1761 = vpack.c.b16 %v1507, %v1505
    %v1762 = vpack.c.b16 %v1508, %v1506
    %v1763 = vpack.c.b16 %v1511, %v1509
    %v1764 = vpack.c.b16 %v1512, %v1510
    %v1765 = vpack.c.b16 %v1515, %v1513
    %v1766 = vpack.c.b16 %v1516, %v1514
    %v1767 = vpack.c.b16 %v1519, %v1517
    %v1768 = vpack.c.b16 %v1520, %v1518
    %v1769 = vpack.c.b16 %v1523, %v1521
    %v1770 = vpack.c.b16 %v1524, %v1522
    %v1771 = vpack.c.b16 %v1527, %v1525
    %v1772 = vpack.c.b16 %v1528, %v1526
    %v1773 = vpack.c.b16 %v1531, %v1529
    %v1774 = vpack.c.b16 %v1532, %v1530
    %v1775 = vpack.c.b16 %v1535, %v1533
    %v1776 = vpack.c.b16 %v1536, %v1534
    %v1777 = vpack.c.b16 %v1539, %v1537
    %v1778 = vpack.c.b16 %v1540, %v1538
    %v1779 = vpack.c.b16 %v1543, %v1541
    %v1780 = vpack.c.b16 %v1544, %v1542
    %v1781 = vpack.c.b16 %v1547, %v1545
    %v1782 = vpack.c.b16 %v1548, %v1546
    %v1783 = vpack.c.b16 %v1551, %v1549
    %v1784 = vpack.c.b16 %v1552, %v1550
    %v1785 = vpack.c.b16 %v1555, %v1553
    %v1786 = vpack.c.b16 %v1556, %v1554
    %v1787 = vpack.c.b16 %v1559, %v1557
    %v1788 = vpack.c.b16 %v1560, %v1558
    %v1789 = vpack.c.b16 %v1563, %v1561
    %v1790 = vpack.c.b16 %v1564, %v1562
    %v1791 = vpack.c.b16 %v1567, %v1565
    %v1792 = vpack.c.b16 %v1568, %v1566
    %v1793 = vpack.c.b16 %v1571, %v1569
    %v1794 = vpack.c.b16 %v1572, %v1570
    %v1795 = vpack.c.b16 %v1575, %v1573
    %v1796 = vpack.c.b16 %v1576, %v1574
    %v1797 = vpack.c.b16 %v1579, %v1577
    %v1798 = vpack.c.b16 %v1580, %v1578
    %v1799 = vpack.c.b16 %v1583, %v1581
    %v1800 = vpack.c.b16 %v1584, %v1582
    %v1801 = vpack.c.b16 %v1587, %v1585
    %v1802 = vpack.c.b16 %v1588, %v1586
    %v1803 = vpack.c.b16 %v1591, %v1589
    %v1804 = vpack.c.b16 %v1592, %v1590
    %v1805 = vpack.c.b16 %v1595, %v1593
    %v1806 = vpack.c.b16 %v1596, %v1594
    %v1807 = vpack.c.b16 %v1599, %v1597
    %v1808 = vpack.c.b16 %v1600, %v1598
    %v1809 = vpack.c.b16 %v1603, %v1601
    %v1810 = vpack.c.b16 %v1604, %v1602
    %v1811 = vpack.c.b16 %v1607, %v1605
    %v1812 = vpack.c.b16 %v1608, %v1606
    %v1813 = vpack.c.b16 %v1611, %v1609
    %v1814 = vpack.c.b16 %v1612, %v1610
    %v1815 = vpack.c.b16 %v1615, %v1613
    %v1816 = vpack.c.b16 %v1616, %v1614
    %v1817 = vpack.c.b16 %v1619, %v1617
    %v1818 = vpack.c.b16 %v1620, %v1618
    %v1819 = vpack.c.b16 %v1623, %v1621
    %v1820 = vpack.c.b16 %v1624, %v1622
    %v1821 = vpack.c.b16 %v1627, %v1625
    %v1822 = vpack.c.b16 %v1628, %v1626
    %v1823 = vpack.c.b16 %v1631, %v1629
    %v1824 = vpack.c.b16 %v1632, %v1630
    %2017 = vmatprep.subr.bf16.mxu0 %v1634
    %2018 = vmatpush1.bf16.msra.mxu0 %v1633
    %2019 = vmatprep.subr.bf16.mxu0 %v1636
    %2020 = vmatpush1.bf16.msra.mxu0 %v1635
    %2021 = vmatprep.subr.bf16.mxu0 %v1638
    %2022 = vmatpush1.bf16.msra.mxu0 %v1637
    %2023 = vmatprep.subr.bf16.mxu0 %v1640
    %2024 = vmatpush1.bf16.msra.mxu0 %v1639
    %2025 = vmatprep.subr.bf16.mxu0 %v1642
    %2026 = vmatpush1.bf16.msra.mxu0 %v1641
    %2027 = vmatprep.subr.bf16.mxu0 %v1644
    %2028 = vmatpush1.bf16.msra.mxu0 %v1643
    %2029 = vmatprep.subr.bf16.mxu0 %v1646
    %2030 = vmatpush1.bf16.msra.mxu0 %v1645
    %2031 = vmatprep.subr.bf16.mxu0 %v1648
    %2032 = vmatpush1.bf16.msra.mxu0 %v1647
    %2033 = vmatprep.subr.bf16.mxu0 %v1650
    %2034 = vmatpush1.bf16.msra.mxu0 %v1649
    %2035 = vmatprep.subr.bf16.mxu0 %v1652
    %2036 = vmatpush1.bf16.msra.mxu0 %v1651
    %2037 = vmatprep.subr.bf16.mxu0 %v1654
    %2038 = vmatpush1.bf16.msra.mxu0 %v1653
    %2039 = vmatprep.subr.bf16.mxu0 %v1656
    %2040 = vmatpush1.bf16.msra.mxu0 %v1655
    %2041 = vmatprep.subr.bf16.mxu0 %v1658
    %2042 = vmatpush1.bf16.msra.mxu0 %v1657
    %2043 = vmatprep.subr.bf16.mxu0 %v1660
    %2044 = vmatpush1.bf16.msra.mxu0 %v1659
    %2045 = vmatprep.subr.bf16.mxu0 %v1662
    %2046 = vmatpush1.bf16.msra.mxu0 %v1661
    %2047 = vmatprep.subr.bf16.mxu0 %v1664
    %2048 = vmatpush1.bf16.msra.mxu0 %v1663
    %2049 = vmatprep.mubr.bf16.mxu0 %v252
    %2050 = vmatmul.mubr.bf16.gmra.mrb[0].mxu0 %v198
    %v2051 = vpop.f32.mrb[0].mxu0
    %v2052 = vadd.f32 %v1050, %v2051
    %v2053 = vpop.f32.mrb[0].mxu0
    %v2054 = vadd.f32 %v1054, %v2053
    %v2055 = vpop.f32.mrb[0].mxu0
    %v2056 = vadd.f32 %v1050, %v2055
    %v2057 = vpop.f32.mrb[0].mxu0
    %v2058 = vadd.f32 %v1054, %v2057
    %2059 = vdwg.mxu0
    %2060 = vmatprep.subr.bf16.mxu0 %v1666
    %2061 = vmatpush1.bf16.msra.mxu0 %v1665
    %2062 = vmatprep.subr.bf16.mxu0 %v1668
    %2063 = vmatpush1.bf16.msra.mxu0 %v1667
    %2064 = vmatprep.subr.bf16.mxu0 %v1670
    %2065 = vmatpush1.bf16.msra.mxu0 %v1669
    %2066 = vmatprep.subr.bf16.mxu0 %v1672
    %2067 = vmatpush1.bf16.msra.mxu0 %v1671
    %2068 = vmatprep.subr.bf16.mxu0 %v1674
    %2069 = vmatpush1.bf16.msra.mxu0 %v1673
    %2070 = vmatprep.subr.bf16.mxu0 %v1676
    %2071 = vmatpush1.bf16.msra.mxu0 %v1675
    %2072 = vmatprep.subr.bf16.mxu0 %v1678
    %2073 = vmatpush1.bf16.msra.mxu0 %v1677
    %2074 = vmatprep.subr.bf16.mxu0 %v1680
    %2075 = vmatpush1.bf16.msra.mxu0 %v1679
    %2076 = vmatprep.subr.bf16.mxu0 %v1682
    %2077 = vmatpush1.bf16.msra.mxu0 %v1681
    %2078 = vmatprep.subr.bf16.mxu0 %v1684
    %2079 = vmatpush1.bf16.msra.mxu0 %v1683
    %2080 = vmatprep.subr.bf16.mxu0 %v1686
    %2081 = vmatpush1.bf16.msra.mxu0 %v1685
    %2082 = vmatprep.subr.bf16.mxu0 %v1688
    %2083 = vmatpush1.bf16.msra.mxu0 %v1687
    %2084 = vmatprep.subr.bf16.mxu0 %v1690
    %2085 = vmatpush1.bf16.msra.mxu0 %v1689
    %2086 = vmatprep.subr.bf16.mxu0 %v1692
    %2087 = vmatpush1.bf16.msra.mxu0 %v1691
    %2088 = vmatprep.subr.bf16.mxu0 %v1694
    %2089 = vmatpush1.bf16.msra.mxu0 %v1693
    %2090 = vmatprep.subr.bf16.mxu0 %v1696
    %2091 = vmatpush1.bf16.msra.mxu0 %v1695
    %2092 = vmatprep.mubr.bf16.mxu0 %v370
    %2093 = vmatmul.mubr.bf16.gmra.mrb[0].mxu0 %v306
    %v2094 = vpop.f32.mrb[0].mxu0
    %v2095 = vadd.f32 %v2052, %v2094
    %v2096 = vpop.f32.mrb[0].mxu0
    %v2097 = vadd.f32 %v2054, %v2096
    %v2098 = vpop.f32.mrb[0].mxu0
    %v2099 = vadd.f32 %v2056, %v2098
    %v2100 = vpop.f32.mrb[0].mxu0
    %v2101 = vadd.f32 %v2058, %v2100
    %2102 = vdwg.mxu0
    %2103 = vmatprep.subr.bf16.mxu0 %v1698
    %2104 = vmatpush1.bf16.msra.mxu0 %v1697
    %2105 = vmatprep.subr.bf16.mxu0 %v1700
    %2106 = vmatpush1.bf16.msra.mxu0 %v1699
    %2107 = vmatprep.subr.bf16.mxu0 %v1702
    %2108 = vmatpush1.bf16.msra.mxu0 %v1701
    %2109 = vmatprep.subr.bf16.mxu0 %v1704
    %2110 = vmatpush1.bf16.msra.mxu0 %v1703
    %2111 = vmatprep.subr.bf16.mxu0 %v1706
    %2112 = vmatpush1.bf16.msra.mxu0 %v1705
    %2113 = vmatprep.subr.bf16.mxu0 %v1708
    %2114 = vmatpush1.bf16.msra.mxu0 %v1707
    %2115 = vmatprep.subr.bf16.mxu0 %v1710
    %2116 = vmatpush1.bf16.msra.mxu0 %v1709
    %2117 = vmatprep.subr.bf16.mxu0 %v1712
    %2118 = vmatpush1.bf16.msra.mxu0 %v1711
    %2119 = vmatprep.subr.bf16.mxu0 %v1714
    %2120 = vmatpush1.bf16.msra.mxu0 %v1713
    %2121 = vmatprep.subr.bf16.mxu0 %v1716
    %2122 = vmatpush1.bf16.msra.mxu0 %v1715
    %2123 = vmatprep.subr.bf16.mxu0 %v1718
    %2124 = vmatpush1.bf16.msra.mxu0 %v1717
    %2125 = vmatprep.subr.bf16.mxu0 %v1720
    %2126 = vmatpush1.bf16.msra.mxu0 %v1719
    %2127 = vmatprep.subr.bf16.mxu0 %v1722
    %2128 = vmatpush1.bf16.msra.mxu0 %v1721
    %2129 = vmatprep.subr.bf16.mxu0 %v1724
    %2130 = vmatpush1.bf16.msra.mxu0 %v1723
    %2131 = vmatprep.subr.bf16.mxu0 %v1726
    %2132 = vmatpush1.bf16.msra.mxu0 %v1725
    %2133 = vmatprep.subr.bf16.mxu0 %v1728
    %2134 = vmatpush1.bf16.msra.mxu0 %v1727
    %2135 = vmatprep.mubr.bf16.mxu0 %v488
    %2136 = vmatmul.mubr.bf16.gmra.mrb[0].mxu0 %v424
    %v2137 = vpop.f32.mrb[0].mxu0
    %v2138 = vadd.f32 %v2095, %v2137
    %v2139 = vpop.f32.mrb[0].mxu0
    %v2140 = vadd.f32 %v2097, %v2139
    %v2141 = vpop.f32.mrb[0].mxu0
    %v2142 = vadd.f32 %v2099, %v2141
    %v2143 = vpop.f32.mrb[0].mxu0
    %v2144 = vadd.f32 %v2101, %v2143
    %2145 = vdwg.mxu0
    %2146 = vmatprep.subr.bf16.mxu0 %v1730
    %2147 = vmatpush1.bf16.msra.mxu0 %v1729
    %2148 = vmatprep.subr.bf16.mxu0 %v1732
    %2149 = vmatpush1.bf16.msra.mxu0 %v1731
    %2150 = vmatprep.subr.bf16.mxu0 %v1734
    %2151 = vmatpush1.bf16.msra.mxu0 %v1733
    %2152 = vmatprep.subr.bf16.mxu0 %v1736
    %2153 = vmatpush1.bf16.msra.mxu0 %v1735
    %2154 = vmatprep.subr.bf16.mxu0 %v1738
    %2155 = vmatpush1.bf16.msra.mxu0 %v1737
    %2156 = vmatprep.subr.bf16.mxu0 %v1740
    %2157 = vmatpush1.bf16.msra.mxu0 %v1739
    %2158 = vmatprep.subr.bf16.mxu0 %v1742
    %2159 = vmatpush1.bf16.msra.mxu0 %v1741
    %2160 = vmatprep.subr.bf16.mxu0 %v1744
    %2161 = vmatpush1.bf16.msra.mxu0 %v1743
    %2162 = vmatprep.subr.bf16.mxu0 %v1746
    %2163 = vmatpush1.bf16.msra.mxu0 %v1745
    %2164 = vmatprep.subr.bf16.mxu0 %v1748
    %2165 = vmatpush1.bf16.msra.mxu0 %v1747
    %2166 = vmatprep.subr.bf16.mxu0 %v1750
    %2167 = vmatpush1.bf16.msra.mxu0 %v1749
    %2168 = vmatprep.subr.bf16.mxu0 %v1752
    %2169 = vmatpush1.bf16.msra.mxu0 %v1751
    %2170 = vmatprep.subr.bf16.mxu0 %v1754
    %2171 = vmatpush1.bf16.msra.mxu0 %v1753
    %2172 = vmatprep.subr.bf16.mxu0 %v1756
    %2173 = vmatpush1.bf16.msra.mxu0 %v1755
    %2174 = vmatprep.subr.bf16.mxu0 %v1758
    %2175 = vmatpush1.bf16.msra.mxu0 %v1757
    %2176 = vmatprep.subr.bf16.mxu0 %v1760
    %2177 = vmatpush1.bf16.msra.mxu0 %v1759
    %2178 = vmatprep.mubr.bf16.mxu0 %v606
    %2179 = vmatmul.mubr.bf16.gmra.mrb[0].mxu0 %v542
    %v2180 = vpop.f32.mrb[0].mxu0
    %v2181 = vadd.f32 %v2138, %v2180
    %v2182 = vpop.f32.mrb[0].mxu0
    %v2183 = vadd.f32 %v2140, %v2182
    %v2184 = vpop.f32.mrb[0].mxu0
    %v2185 = vadd.f32 %v2142, %v2184
    %v2186 = vpop.f32.mrb[0].mxu0
    %v2187 = vadd.f32 %v2144, %v2186
    %2188 = vdwg.mxu0
    %2189 = vmatprep.subr.bf16.mxu0 %v1762
    %2190 = vmatpush1.bf16.msra.mxu0 %v1761
    %2191 = vmatprep.subr.bf16.mxu0 %v1764
    %2192 = vmatpush1.bf16.msra.mxu0 %v1763
    %2193 = vmatprep.subr.bf16.mxu0 %v1766
    %2194 = vmatpush1.bf16.msra.mxu0 %v1765
    %2195 = vmatprep.subr.bf16.mxu0 %v1768
    %2196 = vmatpush1.bf16.msra.mxu0 %v1767
    %2197 = vmatprep.subr.bf16.mxu0 %v1770
    %2198 = vmatpush1.bf16.msra.mxu0 %v1769
    %2199 = vmatprep.subr.bf16.mxu0 %v1772
    %2200 = vmatpush1.bf16.msra.mxu0 %v1771
    %2201 = vmatprep.subr.bf16.mxu0 %v1774
    %2202 = vmatpush1.bf16.msra.mxu0 %v1773
    %2203 = vmatprep.subr.bf16.mxu0 %v1776
    %2204 = vmatpush1.bf16.msra.mxu0 %v1775
    %2205 = vmatprep.subr.bf16.mxu0 %v1778
    %2206 = vmatpush1.bf16.msra.mxu0 %v1777
    %2207 = vmatprep.subr.bf16.mxu0 %v1780
    %2208 = vmatpush1.bf16.msra.mxu0 %v1779
    %2209 = vmatprep.subr.bf16.mxu0 %v1782
    %2210 = vmatpush1.bf16.msra.mxu0 %v1781
    %2211 = vmatprep.subr.bf16.mxu0 %v1784
    %2212 = vmatpush1.bf16.msra.mxu0 %v1783
    %2213 = vmatprep.subr.bf16.mxu0 %v1786
    %2214 = vmatpush1.bf16.msra.mxu0 %v1785
    %2215 = vmatprep.subr.bf16.mxu0 %v1788
    %2216 = vmatpush1.bf16.msra.mxu0 %v1787
    %2217 = vmatprep.subr.bf16.mxu0 %v1790
    %2218 = vmatpush1.bf16.msra.mxu0 %v1789
    %2219 = vmatprep.subr.bf16.mxu0 %v1792
    %2220 = vmatpush1.bf16.msra.mxu0 %v1791
    %2221 = vmatprep.mubr.bf16.mxu0 %v734
    %2222 = vmatmul.mubr.bf16.gmra.mrb[0].mxu0 %v660
    %v2223 = vpop.f32.mrb[0].mxu0
    %v2224 = vadd.f32 %v2181, %v2223
    %v2225 = vpop.f32.mrb[0].mxu0
    %v2226 = vadd.f32 %v2183, %v2225
    %v2227 = vpop.f32.mrb[0].mxu0
    %v2228 = vadd.f32 %v2185, %v2227
    %v2229 = vpop.f32.mrb[0].mxu0
    %v2230 = vadd.f32 %v2187, %v2229
    %2231 = vdwg.mxu0
    %2232 = vmatprep.subr.bf16.mxu0 %v1794
    %2233 = vmatpush1.bf16.msra.mxu0 %v1793
    %2234 = vmatprep.subr.bf16.mxu0 %v1796
    %2235 = vmatpush1.bf16.msra.mxu0 %v1795
    %2236 = vmatprep.subr.bf16.mxu0 %v1798
    %2237 = vmatpush1.bf16.msra.mxu0 %v1797
    %2238 = vmatprep.subr.bf16.mxu0 %v1800
    %2239 = vmatpush1.bf16.msra.mxu0 %v1799
    %2240 = vmatprep.subr.bf16.mxu0 %v1802
    %2241 = vmatpush1.bf16.msra.mxu0 %v1801
    %2242 = vmatprep.subr.bf16.mxu0 %v1804
    %2243 = vmatpush1.bf16.msra.mxu0 %v1803
    %2244 = vmatprep.subr.bf16.mxu0 %v1806
    %2245 = vmatpush1.bf16.msra.mxu0 %v1805
    %2246 = vmatprep.subr.bf16.mxu0 %v1808
    %2247 = vmatpush1.bf16.msra.mxu0 %v1807
    %2248 = vmatprep.subr.bf16.mxu0 %v1810
    %2249 = vmatpush1.bf16.msra.mxu0 %v1809
    %2250 = vmatprep.subr.bf16.mxu0 %v1812
    %2251 = vmatpush1.bf16.msra.mxu0 %v1811
    %2252 = vmatprep.subr.bf16.mxu0 %v1814
    %2253 = vmatpush1.bf16.msra.mxu0 %v1813
    %2254 = vmatprep.subr.bf16.mxu0 %v1816
    %2255 = vmatpush1.bf16.msra.mxu0 %v1815
    %2256 = vmatprep.subr.bf16.mxu0 %v1818
    %2257 = vmatpush1.bf16.msra.mxu0 %v1817
    %2258 = vmatprep.subr.bf16.mxu0 %v1820
    %2259 = vmatpush1.bf16.msra.mxu0 %v1819
    %2260 = vmatprep.subr.bf16.mxu0 %v1822
    %2261 = vmatpush1.bf16.msra.mxu0 %v1821
    %2262 = vmatprep.subr.bf16.mxu0 %v1824
    %2263 = vmatpush1.bf16.msra.mxu0 %v1823
    %2264 = vmatprep.mubr.bf16.mxu0 %v852
    %2265 = vmatmul.mubr.bf16.gmra.mrb[0].mxu0 %v798
    %v2266 = vpop.f32.mrb[0].mxu0
    %v2267 = vadd.f32 %v2224, %v2266
    %v2268 = vpop.f32.mrb[0].mxu0
    %v2269 = vadd.f32 %v2226, %v2268
    %v2270 = vpop.f32.mrb[0].mxu0
    %v2271 = vadd.f32 %v2228, %v2270
    %v2272 = vpop.f32.mrb[0].mxu0
    %v2273 = vadd.f32 %v2230, %v2272
    %2274 = vdwg.mxu0
    %v2275 = vmax.f32 %v2267, 0.0
    %v2276 = vmax.f32 %v2269, 0.0
    %v2277 = vmax.f32 %v2271, 0.0
    %v2278 = vmax.f32 %v2273, 0.0
    %v2279 = vpack.c.bf16 %v2277, %v2275
    %v2280 = vpack.c.bf16 %v2278, %v2276
    %v2281 = vld [vmem:[%s5] sm:$0xf]
    %v2282 = vld [vmem:[%s5 + $0x4] sm:$0xf]
    %v2283 = vld [vmem:[%s5 + $0x8] sm:$0xf]
    %v2284 = vld [vmem:[%s5 + $0xc] sm:$0xf]
    %v2285 = vld [vmem:[%s5 + $0x10] sm:$0xf]
    %v2286 = vld [vmem:[%s5 + $0x14] sm:$0xf]
    %v2287 = vld [vmem:[%s5 + $0x18] sm:$0xf]
    %v2288 = vld [vmem:[%s5 + $0x1c] sm:$0xf]
    %v2289 = vld [vmem:[%s5 + $0x20] sm:$0xf]
    %v2290 = vld [vmem:[%s5 + $0x24] sm:$0xf]
    %v2291 = vld [vmem:[%s5 + $0x28] sm:$0xf]
    %v2292 = vld [vmem:[%s5 + $0x2c] sm:$0xf]
    %v2293 = vld [vmem:[%s5 + $0x30] sm:$0xf]
    %v2294 = vld [vmem:[%s5 + $0x34] sm:$0xf]
    %v2295 = vld [vmem:[%s5 + $0x38] sm:$0xf]
    %v2296 = vld [vmem:[%s5 + $0x3c] sm:$0xf]
    %v2297 = vld [vmem:[%s5 + $0x40] sm:$0xf]
    %v2298 = vld [vmem:[%s5 + $0x44] sm:$0xf]
    %v2299 = vld [vmem:[%s5 + $0x48] sm:$0xf]
    %v2300 = vld [vmem:[%s5 + $0x4c] sm:$0xf]
    %v2301 = vld [vmem:[%s5 + $0x50] sm:$0xf]
    %v2302 = vld [vmem:[%s5 + $0x54] sm:$0xf]
    %v2303 = vld [vmem:[%s5 + $0x58] sm:$0xf]
    %v2304 = vld [vmem:[%s5 + $0x5c] sm:$0xf]
    %v2305 = vld [vmem:[%s5 + $0x60] sm:$0xf]
    %v2306 = vld [vmem:[%s5 + $0x64] sm:$0xf]
    %v2307 = vld [vmem:[%s5 + $0x68] sm:$0xf]
    %v2308 = vld [vmem:[%s5 + $0x6c] sm:$0xf]
    %v2309 = vld [vmem:[%s5 + $0x70] sm:$0xf]
    %v2310 = vld [vmem:[%s5 + $0x74] sm:$0xf]
    %v2311 = vld [vmem:[%s5 + $0x78] sm:$0xf]
    %v2312 = vld [vmem:[%s5 + $0x7c] sm:$0xf]
    %v2313 = vld [vmem:[%s6] sm:$0x1]
    %v2315 = vlaneseq
    %v2316 = vshrl.u32 %v2315, 7
    %v2317 = vsub.s32 0, %v2316
    %v2318 = vrot.slane %v2313, %v2317
    %v2352 = vunpack.c.l.b16 %v2281
    %v2353 = vunpack.c.l.b16 %v2282
    %v2354 = vunpack.c.l.b16 %v2283
    %v2355 = vunpack.c.l.b16 %v2284
    %v2356 = vunpack.c.l.b16 %v2285
    %v2357 = vunpack.c.l.b16 %v2286
    %v2358 = vunpack.c.l.b16 %v2287
    %v2359 = vunpack.c.l.b16 %v2288
    %v2360 = vunpack.c.l.b16 %v2289
    %v2361 = vunpack.c.l.b16 %v2290
    %v2362 = vunpack.c.l.b16 %v2291
    %v2363 = vunpack.c.l.b16 %v2292
    %v2364 = vunpack.c.l.b16 %v2293
    %v2365 = vunpack.c.l.b16 %v2294
    %v2366 = vunpack.c.l.b16 %v2295
    %v2367 = vunpack.c.l.b16 %v2296
    %v2368 = vunpack.c.l.b16 %v2297
    %v2369 = vunpack.c.l.b16 %v2298
    %v2370 = vunpack.c.l.b16 %v2299
    %v2371 = vunpack.c.l.b16 %v2300
    %v2372 = vunpack.c.l.b16 %v2301
    %v2373 = vunpack.c.l.b16 %v2302
    %v2374 = vunpack.c.l.b16 %v2303
    %v2375 = vunpack.c.l.b16 %v2304
    %v2376 = vunpack.c.l.b16 %v2305
    %v2377 = vunpack.c.l.b16 %v2306
    %v2378 = vunpack.c.l.b16 %v2307
    %v2379 = vunpack.c.l.b16 %v2308
    %v2380 = vunpack.c.l.b16 %v2309
    %v2381 = vunpack.c.l.b16 %v2310
    %v2382 = vunpack.c.l.b16 %v2311
    %v2383 = vunpack.c.l.b16 %v2312
    %v2384 = vpack.c.b16 %v2353, %v2352
    %v2385 = vpack.c.b16 %v2355, %v2354
    %v2386 = vpack.c.b16 %v2357, %v2356
    %v2387 = vpack.c.b16 %v2359, %v2358
    %v2388 = vpack.c.b16 %v2361, %v2360
    %v2389 = vpack.c.b16 %v2363, %v2362
    %v2390 = vpack.c.b16 %v2365, %v2364
    %v2391 = vpack.c.b16 %v2367, %v2366
    %v2392 = vpack.c.b16 %v2369, %v2368
    %v2393 = vpack.c.b16 %v2371, %v2370
    %v2394 = vpack.c.b16 %v2373, %v2372
    %v2395 = vpack.c.b16 %v2375, %v2374
    %v2396 = vpack.c.b16 %v2377, %v2376
    %v2397 = vpack.c.b16 %v2379, %v2378
    %v2398 = vpack.c.b16 %v2381, %v2380
    %v2399 = vpack.c.b16 %v2383, %v2382
    %2416 = vmatprep.subr.bf16.mxu0 0
    %2417 = vmatpush1.bf16.msra.mxu0 %v2384
    %2418 = vmatprep.subr.bf16.mxu0 0
    %2419 = vmatpush1.bf16.msra.mxu0 %v2385
    %2420 = vmatprep.subr.bf16.mxu0 0
    %2421 = vmatpush1.bf16.msra.mxu0 %v2386
    %2422 = vmatprep.subr.bf16.mxu0 0
    %2423 = vmatpush1.bf16.msra.mxu0 %v2387
    %2424 = vmatprep.subr.bf16.mxu0 0
    %2425 = vmatpush1.bf16.msra.mxu0 %v2388
    %2426 = vmatprep.subr.bf16.mxu0 0
    %2427 = vmatpush1.bf16.msra.mxu0 %v2389
    %2428 = vmatprep.subr.bf16.mxu0 0
    %2429 = vmatpush1.bf16.msra.mxu0 %v2390
    %2430 = vmatprep.subr.bf16.mxu0 0
    %2431 = vmatpush1.bf16.msra.mxu0 %v2391
    %2432 = vmatprep.subr.bf16.mxu0 0
    %2433 = vmatpush1.bf16.msra.mxu0 %v2392
    %2434 = vmatprep.subr.bf16.mxu0 0
    %2435 = vmatpush1.bf16.msra.mxu0 %v2393
    %2436 = vmatprep.subr.bf16.mxu0 0
    %2437 = vmatpush1.bf16.msra.mxu0 %v2394
    %2438 = vmatprep.subr.bf16.mxu0 0
    %2439 = vmatpush1.bf16.msra.mxu0 %v2395
    %2440 = vmatprep.subr.bf16.mxu0 0
    %2441 = vmatpush1.bf16.msra.mxu0 %v2396
    %2442 = vmatprep.subr.bf16.mxu0 0
    %2443 = vmatpush1.bf16.msra.mxu0 %v2397
    %2444 = vmatprep.subr.bf16.mxu0 0
    %2445 = vmatpush1.bf16.msra.mxu0 %v2398
    %2446 = vmatprep.subr.bf16.mxu0 0
    %2447 = vmatpush1.bf16.msra.mxu0 %v2399
    %2448 = vmatprep.mubr.bf16.mxu0 %v2280
    %2449 = vmatmul.mubr.bf16.gmra.mrb[0].mxu0 %v2279
    %v2450 = vpop.f32.mrb[0].mxu0
    %v2451 = vadd.f32 %v2318, %v2450
    %v2452 = vpop.f32.mrb[0].mxu0
    %v2453 = vpop.f32.mrb[0].mxu0
    %v2454 = vadd.f32 %v2318, %v2453
    %v2455 = vpop.f32.mrb[0].mxu0
    %2456 = vdwg.mxu0
    %v2457 = vmax.f32 %v2451, 0.0
    %v2458 = vmax.f32 %v2454, 0.0
    %v2459 = vpack.c.bf16 %v2458, %v2457
    %v2460 = vld [vmem:[#allocation4] sm:$0xf]
    %v2461 = vld [vmem:[#allocation4 + $0x4] sm:$0xf]
    %v2462 = vld [vmem:[#allocation4 + $0x8] sm:$0xf]
    %v2463 = vld [vmem:[#allocation4 + $0xc] sm:$0xf]
    %v2464 = vld [vmem:[#allocation4 + $0x10] sm:$0xf]
    %v2465 = vld [vmem:[#allocation4 + $0x14] sm:$0xf]
    %v2466 = vld [vmem:[#allocation4 + $0x18] sm:$0xf]
    %v2467 = vld [vmem:[#allocation4 + $0x1c] sm:$0xf]
    %v2468 = vld [vmem:[#allocation4 + $0x20] sm:$0xf]
    %v2469 = vld [vmem:[#allocation4 + $0x24] sm:$0xf]
    %v2470 = vld [vmem:[#allocation4 + $0x28] sm:$0xf]
    %v2471 = vld [vmem:[#allocation4 + $0x2c] sm:$0xf]
    %v2472 = vld [vmem:[#allocation4 + $0x30] sm:$0xf]
    %v2473 = vld [vmem:[#allocation4 + $0x34] sm:$0xf]
    %v2474 = vld [vmem:[#allocation4 + $0x38] sm:$0xf]
    %v2475 = vld [vmem:[#allocation4 + $0x3c] sm:$0xf]
    %v2476 = vld [vmem:[%s8] sm:$0x1]
    %v2478 = vlaneseq
    %v2479 = vshrl.u32 %v2478, 7
    %v2480 = vsub.s32 0, %v2479
    %v2481 = vrot.slane %v2476, %v2480
    %v2499 = vunpack.c.l.b16 %v2460
    %v2500 = vunpack.c.l.b16 %v2461
    %v2501 = vunpack.c.l.b16 %v2462
    %v2502 = vunpack.c.l.b16 %v2463
    %v2503 = vunpack.c.l.b16 %v2464
    %v2504 = vunpack.c.l.b16 %v2465
    %v2505 = vunpack.c.l.b16 %v2466
    %v2506 = vunpack.c.l.b16 %v2467
    %v2507 = vunpack.c.l.b16 %v2468
    %v2508 = vunpack.c.l.b16 %v2469
    %v2509 = vunpack.c.l.b16 %v2470
    %v2510 = vunpack.c.l.b16 %v2471
    %v2511 = vunpack.c.l.b16 %v2472
    %v2512 = vunpack.c.l.b16 %v2473
    %v2513 = vunpack.c.l.b16 %v2474
    %v2514 = vunpack.c.l.b16 %v2475
    %v2515 = vpack.c.b16 %v2500, %v2499
    %v2516 = vpack.c.b16 %v2502, %v2501
    %v2517 = vpack.c.b16 %v2504, %v2503
    %v2518 = vpack.c.b16 %v2506, %v2505
    %v2519 = vpack.c.b16 %v2508, %v2507
    %v2520 = vpack.c.b16 %v2510, %v2509
    %v2521 = vpack.c.b16 %v2512, %v2511
    %v2522 = vpack.c.b16 %v2514, %v2513
    %2531 = vmatprep.subr.bf16.mxu0 0
    %2532 = vmatpush1.bf16.msra.mxu0 %v2515
    %2533 = vmatprep.subr.bf16.mxu0 0
    %2534 = vmatpush1.bf16.msra.mxu0 %v2516
    %2535 = vmatprep.subr.bf16.mxu0 0
    %2536 = vmatpush1.bf16.msra.mxu0 %v2517
    %2537 = vmatprep.subr.bf16.mxu0 0
    %2538 = vmatpush1.bf16.msra.mxu0 %v2518
    %2539 = vmatprep.subr.bf16.mxu0 0
    %2540 = vmatpush1.bf16.msra.mxu0 %v2519
    %2541 = vmatprep.subr.bf16.mxu0 0
    %2542 = vmatpush1.bf16.msra.mxu0 %v2520
    %2543 = vmatprep.subr.bf16.mxu0 0
    %2544 = vmatpush1.bf16.msra.mxu0 %v2521
    %2545 = vmatprep.subr.bf16.mxu0 0
    %2546 = vmatpush1.bf16.msra.mxu0 %v2522
    %2547 = vmatprep.subr.bf16.mxu0 0
    %2548 = vmatpush1.bf16.msra.mxu0 0
    %2549 = vmatprep.subr.bf16.mxu0 0
    %2550 = vmatpush1.bf16.msra.mxu0 0
    %2551 = vmatprep.subr.bf16.mxu0 0
    %2552 = vmatpush1.bf16.msra.mxu0 0
    %2553 = vmatprep.subr.bf16.mxu0 0
    %2554 = vmatpush1.bf16.msra.mxu0 0
    %2555 = vmatprep.subr.bf16.mxu0 0
    %2556 = vmatpush1.bf16.msra.mxu0 0
    %2557 = vmatprep.subr.bf16.mxu0 0
    %2558 = vmatpush1.bf16.msra.mxu0 0
    %2559 = vmatprep.subr.bf16.mxu0 0
    %2560 = vmatpush1.bf16.msra.mxu0 0
    %2561 = vmatprep.subr.bf16.mxu0 0
    %2562 = vmatpush1.bf16.msra.mxu0 0
    %2563 = vmatprep.mubr.bf16.mxu0 0
    %2564 = vmatmul.mubr.bf16.gmra.mrb[0].mxu0 %v2459
    %v2565 = vpop.f32.mrb[0].mxu0
    %v2566 = vadd.f32 %v2481, %v2565
    %v2567 = vpop.f32.mrb[0].mxu0
    %v2568 = vpop.f32.mrb[0].mxu0
    %v2569 = vadd.f32 %v2481, %v2568
    %v2570 = vpop.f32.mrb[0].mxu0
    %2571 = vdwg.mxu0
    %v2572 = vmax.f32 %v2566, 0.0
    %v2573 = vmax.f32 %v2569, 0.0
    %2574 = vst [vmem:[%s9] sm:$0xff] %v2572
    %2575 = vst [vmem:[%s9 + $0x8] sm:$0xff] %v2573
    // Predicated region
    $region46: #{encoder_forward.1} parent=1 // pred_check
      _
    $region47: #{encoder_forward.1} parent=1 // pred_check_branch
      %2577 = sbr.rel (0) target = $region49
    $region48: #{encoder_forward.1} parent=1 // pred_region
      _
    $region49: #{encoder_forward.1} parent=1 // pred_fallthru
      _
    // Predicated region
    $region50: #{encoder_forward.1} parent=1 // pred_check
      _
    $region51: #{encoder_forward.1} parent=1 // pred_check_branch
      %2579 = sbr.rel (0) target = $region53
    $region52: #{encoder_forward.1} parent=1 // pred_region
      _
    $region53: #{encoder_forward.1} parent=1 // pred_fallthru
      _
    %2580 = vsyncpa [#allocation3], 1
    %2581 = vsyncpa [#allocation5], 1

</llo_original>
